<compile_context>
chip_gen: v7x
topology: tpu7x:2x2x1
jax: 0.10.0
libtpu: 0.0.40
codegen_flags: <defaults>
</compile_context>

<pallas_src>
import functools

import numpy as np

import jax
import jax.numpy as jnp
from jax.experimental import pallas as pl
from jax.experimental.pallas import tpu as pltpu

BN_EPS = 1e-5

# conv layer plan of EncoderCNN: (cin, cout, stride) for the six Conv2d(k=2) blocks
_CONV_PLAN = [(1, 4, 2), (4, 4, 1), (4, 8, 2), (8, 8, 1), (8, 8, 2), (8, 8, 1)]


def _align(n, m):
    return (n + m - 1) // m * m


# ----------------------------------------------------------------------------
# fused Pallas kernel
# ----------------------------------------------------------------------------
def _conv_bn_relu(x, a_ref, b_ref, lp):
    """One Conv2d(k=2) + BatchNorm2d(train) + ReLU block.

    x: (B*IH, IW*Cin) f32 activation, layout x[b*IH + y, xcol*Cin + ci].
    Returns (B*OH, OW*Cout) f32.
    """
    B, IH, OH = lp["B"], lp["ih"], lp["oh"]
    iwc, owc, stride = lp["iwc"], lp["owc"], lp["stride"]

    # conv: one bf16 MXU matmul against Wcat = [W_dy0 | W_dy1]
    wcat = a_ref[lp["wcat"]:lp["wcat"] + iwc, 0:2 * owc]            # bf16
    u = jnp.dot(x.astype(jnp.bfloat16), wcat,
                preferred_element_type=jnp.float32)                 # (B*IH, 2*owc)

    if stride == 1:
        # kernel-row taps are shifted per-image views: static slices + add (no MXU)
        parts = []
        for bb in range(B):
            r = bb * IH
            parts.append(u[r:r + OH, 0:owc] + u[r + 1:r + 1 + OH, owc:2 * owc])
        y = parts[0] if B == 1 else jnp.concatenate(parts, axis=0)
    else:
        # stride-2 row gather + tap add fused into ONE 0/1 selector matmul
        v = jnp.concatenate([u[:, 0:owc], u[:, owc:2 * owc]], axis=0)   # (2*B*IH, owc)
        scat = a_ref[lp["scat"]:lp["scat"] + B * OH, 0:2 * B * IH]      # bf16, exact
        y = jnp.dot(scat, v.astype(jnp.bfloat16),
                    preferred_element_type=jnp.float32)                 # (B*OH, owc)

    # one-pass train-mode BN statistics (f32, biased variance), per output channel
    s_cols = jnp.sum(y, axis=0, keepdims=True)                      # (1, owc)
    ss_cols = jnp.sum(y * y, axis=0, keepdims=True)                 # (1, owc)
    stats = jnp.concatenate([s_cols, ss_cols], axis=0)              # (2, owc)
    qn = b_ref[lp["qn"]:lp["qn"] + owc, 0:owc]                      # f32, incl. 1/N
    st = jnp.dot(stats, qn, preferred_element_type=jnp.float32)     # ONE stat dot
    mean = st[0:1, :]
    var = jnp.maximum(st[1:2, :] - mean * mean, 0.0)                # clamp >= 0
    inv = jax.lax.rsqrt(var + BN_EPS)
    gamma = b_ref[lp["gb"]:lp["gb"] + 1, 0:owc]
    beta = b_ref[lp["gb"] + 1:lp["gb"] + 2, 0:owc]
    return jnp.maximum((y - mean) * (inv * gamma) + beta, 0.0)


def _start_model_kernel(x_ref, a_ref, b_ref, o_ref, *, layers, head):
    x = x_ref[...]                                                  # (B*32, 32) f32
    for lp in layers:
        x = _conv_bn_relu(x, a_ref, b_ref, lp)

    # head: spatial mean folded into Wh = P @ Wg / L; project then per-image row sum
    B, ihl, owc = head["B"], head["ih"], head["owc"]
    wh = a_ref[head["wh"]:head["wh"] + owc, :]                      # bf16 (owc, 128)
    z = jnp.dot(x.astype(jnp.bfloat16), wh,
                preferred_element_type=jnp.float32)                 # (B*ihl, 128)
    rows = [jnp.sum(z[bb * ihl:(bb + 1) * ihl, :], axis=0, keepdims=True)
            for bb in range(B)]
    y = rows[0] if B == 1 else jnp.concatenate(rows, axis=0)        # (B, 128)
    hf = head["hf"]
    y = y + b_ref[hf:hf + 1, :]                                     # + fc bias row

    # baked column masks: [pi | mu_x | mu_y | sigma_x | sigma_y | rho | pad]
    m_pi = jnp.broadcast_to(b_ref[hf + 1:hf + 2, :], y.shape) > 0.5
    m_exp = jnp.broadcast_to(b_ref[hf + 2:hf + 3, :], y.shape) > 0.5
    m_tanh = jnp.broadcast_to(b_ref[hf + 3:hf + 4, :], y.shape) > 0.5

    neg_big = jnp.float32(-1e30)
    pi_max = jnp.max(jnp.where(m_pi, y, neg_big), axis=1, keepdims=True)
    e = jnp.exp(y - pi_max)
    pi_den = jnp.sum(jnp.where(m_pi, e, 0.0), axis=1, keepdims=True)

    out = jnp.where(m_pi, e / pi_den, y)               # softmax over the pi block
    out = jnp.where(m_exp, e * jnp.exp(pi_max), out)   # exp(y), reusing e
    out = jnp.where(m_tanh, jnp.tanh(y), out)          # rho_xy
    o_ref[...] = out                                   # single lane-dense store


# ----------------------------------------------------------------------------
# one-time parameter preparation (host side, numpy; all re-layouts live here)
# ----------------------------------------------------------------------------
def prepare_start_model(params, batch, image_hw, enc_hidden_size, M):
    B = batch
    IH, IW = image_hw
    out_w = max(128, _align(6 * M, 128))        # lane-dense head / output width
    width = out_w                               # both constant packs use this width

    a_blocks, b_blocks = [], []                 # (row_offset, array)
    a_off, b_off = 0, 0

    def add_a(arr):                             # bf16 matmul-operand pack
        nonlocal a_off
        off = a_off
        a_blocks.append((off, np.asarray(arr, np.float32)))
        a_off = _align(off + arr.shape[0], 16)
        return off

    def add_b(arr):                             # f32 BN / head-epilogue pack
        nonlocal b_off
        off = b_off
        b_blocks.append((off, np.asarray(arr, np.float32)))
        b_off = _align(off + arr.shape[0], 8)
        return off

    layers = []
    for (cin, cout, stride), (w, _bias, gamma, beta) in zip(_CONV_PLAN, params["conv"]):
        OH = (IH - 2) // stride + 1
        OW = (IW - 2) // stride + 1
        iwc, owc = IW * cin, OW * cout
        assert 2 * owc <= width and 2 * B * IH <= width

        # Wcat = [W_dy0 | W_dy1]: W_dy[(s*ox+dx)*Cin+ci, ox*Cout+co] += w[co,ci,dy,dx]
        wcat = np.zeros((iwc, 2 * owc), np.float32)
        w_np = np.asarray(w, np.float32)                       # torch OIHW
        for dy in range(2):
            for dx in range(2):
                tap = w_np[:, :, dy, dx].T                     # (Cin, Cout)
                for ox in range(OW):
                    r = (stride * ox + dx) * cin
                    c0 = dy * owc + ox * cout
                    wcat[r:r + cin, c0:c0 + cout] += tap
        wcat_off = add_a(wcat)

        scat_off = -1
        if stride != 1:
            # Y[b*OH+oy] = U0[b*IH + s*oy] + U1[b*IH + s*oy + 1],  V = [U0 ; U1]
            scat = np.zeros((B * OH, 2 * B * IH), np.float32)
            for bb in range(B):
                for oy in range(OH):
                    scat[bb * OH + oy, bb * IH + stride * oy] = 1.0
                    scat[bb * OH + oy, B * IH + bb * IH + stride * oy + 1] = 1.0
            scat_off = add_a(scat)

        # Qn: same-channel averaging (includes 1/(B*OH*OW)); gamma/beta rows (f32)
        ch = np.arange(owc) % cout
        qn = (ch[:, None] == ch[None, :]).astype(np.float32) / float(B * OH * OW)
        qn_off = add_b(qn)
        gb = np.stack([np.tile(np.asarray(gamma, np.float32), OW),
                       np.tile(np.asarray(beta, np.float32), OW)], axis=0)
        gb_off = add_b(gb)

        layers.append(dict(B=B, ih=IH, oh=OH, iwc=iwc, owc=owc, stride=stride,
                           wcat=wcat_off, scat=scat_off, qn=qn_off, gb=gb_off))
        IH, IW = OH, OW

    c_fin = _CONV_PLAN[-1][1]
    assert enc_hidden_size == c_fin, \
        "view(B, -1, enc_hidden_size) must regroup by the final channel count"

    # head: spatial-mean folded into Wh = (P @ Wg) / L, fc columns regrouped so the
    # kernel output is [pi | mu_x | mu_y | sigma_x | sigma_y | rho] blocks of M.
    L = IH * IW
    p = np.zeros((IW * c_fin, c_fin), np.float32)
    for ox in range(IW):
        p[ox * c_fin:(ox + 1) * c_fin, :] = np.eye(c_fin, dtype=np.float32)
    fc_w = np.asarray(params["fc_w"], np.float32)              # (6M, H) torch layout
    fc_b = np.asarray(params["fc_b"], np.float32)
    wg = fc_w.T.reshape(c_fin, M, 6).transpose(0, 2, 1).reshape(c_fin, 6 * M)
    bg = fc_b.reshape(M, 6).T.reshape(6 * M)
    wh = np.zeros((IW * c_fin, out_w), np.float32)
    wh[:, :6 * M] = (p @ wg) / float(L)
    wh_off = add_a(wh)

    headf = np.zeros((4, out_w), np.float32)                   # bias + 3 masks
    headf[0, :6 * M] = bg
    headf[1, 0:M] = 1.0                                        # pi    -> softmax
    headf[2, 3 * M:5 * M] = 1.0                                # sigma -> exp
    headf[3, 5 * M:6 * M] = 1.0                                # rho   -> tanh
    hf_off = add_b(headf)

    a_pack = np.zeros((max(_align(a_off, 16), 16), width), np.float32)
    for off, arr in a_blocks:
        a_pack[off:off + arr.shape[0], :arr.shape[1]] = arr
    b_pack = np.zeros((max(_align(b_off, 8), 8), width), np.float32)
    for off, arr in b_blocks:
        b_pack[off:off + arr.shape[0], :arr.shape[1]] = arr

    head = dict(B=B, ih=IH, owc=IW * c_fin, wh=wh_off, hf=hf_off)
    return dict(a_pack=jnp.asarray(a_pack, jnp.bfloat16),      # matmul operands
                b_pack=jnp.asarray(b_pack, jnp.float32),       # BN / epilogue
                layers=tuple(layers), head=head,
                batch=B, M=M, out_w=out_w)


def make_start_model_forward(prepared):
    layers = prepared["layers"]
    head = prepared["head"]
    a_pack = prepared["a_pack"]
    b_pack = prepared["b_pack"]
    B = prepared["batch"]
    M = prepared["M"]
    out_w = prepared["out_w"]

    kernel = functools.partial(_start_model_kernel, layers=layers, head=head)
    vmem = pl.BlockSpec(memory_space=pltpu.MemorySpace.VMEM)
    # Gridless single launch: <1 MiB resident, so no tiling / vmem_limit needed on
    # v5e/v6e/v7x.  (B=2: a batch/core grid would be pure overhead; see header.)
    fused_call = pl.pallas_call(
        kernel,
        out_shape=jax.ShapeDtypeStruct((B, out_w), jnp.float32),
        in_specs=[vmem, vmem, vmem],
        out_specs=vmem,
    )

    @jax.jit
    def forward(img_nchw):
        b, c, h, w = img_nchw.shape
        assert c == _CONV_PLAN[0][0] == 1
        # Cin == 1  =>  NCHW -> (B*H, W*Cin) is a pure (copy-free) reshape
        x2d = img_nchw.astype(jnp.float32).reshape(b * h, w * c)
        out = fused_call(x2d, a_pack, b_pack)
        return tuple(out[:, j * M:(j + 1) * M] for j in range(6))

    return forward


# ----------------------------------------------------------------------------
# parameter init (torch-style layouts) and a pure-JAX reference for verification
# ----------------------------------------------------------------------------
def init_params(key, enc_hidden_size, M):
    convs = []
    for (cin, cout, _s) in _CONV_PLAN:
        key, k1, k2, k3, k4 = jax.random.split(key, 5)
        w = 0.3 * jax.random.normal(k1, (cout, cin, 2, 2), jnp.float32)  # torch OIHW
        b = 0.1 * jax.random.normal(k2, (cout,), jnp.float32)  # no-op under train BN
        g = 1.0 + 0.1 * jax.random.normal(k3, (cout,), jnp.float32)      # BN gamma
        be = 0.1 * jax.random.normal(k4, (cout,), jnp.float32)           # BN beta
        convs.append((w, b, g, be))
    key, kw, kb = jax.random.split(key, 3)
    fc_w = 0.2 * jax.random.normal(kw, (6 * M, enc_hidden_size), jnp.float32)
    fc_b = 0.1 * jax.random.normal(kb, (6 * M,), jnp.float32)
    return {"conv": convs, "fc_w": fc_w, "fc_b": fc_b}


def reference_forward(img_nchw, params, enc_hidden_size, M):
    """Plain-JAX mirror of the PyTorch forward (train-mode BatchNorm)."""
    x = img_nchw.astype(jnp.float32)
    for (cin, cout, stride), (w, b, gamma, beta) in zip(_CONV_PLAN, params["conv"]):
        y = jax.lax.conv_general_dilated(
            x, w, window_strides=(stride, stride), padding="VALID",
            dimension_numbers=("NCHW", "OIHW", "NCHW"),
            precision=jax.lax.Precision.HIGHEST)
        y = y + b.reshape(1, cout, 1, 1)
        mean = jnp.mean(y, axis=(0, 2, 3), keepdims=True)
        var = jnp.mean(jnp.square(y - mean), axis=(0, 2, 3), keepdims=True)
        y = (y - mean) * jax.lax.rsqrt(var + BN_EPS)
        y = y * gamma.reshape(1, cout, 1, 1) + beta.reshape(1, cout, 1, 1)
        x = jnp.maximum(y, 0.0)
    bsz = x.shape[0]
    enc = jnp.transpose(x, (0, 2, 3, 1)).reshape(bsz, -1, enc_hidden_size)
    feat = jnp.mean(enc, axis=1)
    y = feat @ params["fc_w"].T + params["fc_b"]
    yg = y.reshape(bsz, M, 6)
    return (jax.nn.softmax(yg[:, :, 0], axis=1), yg[:, :, 1], yg[:, :, 2],
            jnp.exp(yg[:, :, 3]), jnp.exp(yg[:, :, 4]), jnp.tanh(yg[:, :, 5]))


if __name__ == "__main__":
    ENC_HIDDEN_SIZE = 8   # final feature map is 2x2x8 -> enc rows (B, 4, 8)
    M = 20                # number of GMM mixtures
    B, H, W = 2, 32, 32

    key = jax.random.PRNGKey(0)
    k_img, k_par = jax.random.split(key)
    img = jax.random.normal(k_img, (B, 1, H, W), jnp.float32)     # (B, C, H, W)
    params = init_params(k_par, ENC_HIDDEN_SIZE, M)

    prepared = prepare_start_model(params, batch=B, image_hw=(H, W),
                                   enc_hidden_size=ENC_HIDDEN_SIZE, M=M)
    forward = make_start_model_forward(prepared)

    outs = jax.block_until_ready(forward(img))
    pi, mu_x, mu_y, sigma_x, sigma_y, rho_xy = outs

    names = ["pi", "mu_x", "mu_y", "sigma_x", "sigma_y", "rho_xy"]
    for name, t in zip(names, outs):
        assert t.shape == (B, M), (name, t.shape)
    assert jnp.allclose(jnp.sum(pi, axis=1), 1.0, atol=1e-4)
    assert bool(jnp.all(sigma_x > 0)) and bool(jnp.all(sigma_y > 0))
    assert bool(jnp.all(jnp.abs(rho_xy) <= 1.0))

    # numerical check against the f32/HIGHEST plain-JAX reference of the PyTorch
    # module; tolerance reflects bf16 matmul operands inside the kernel.
    refs = reference_forward(img, params, ENC_HIDDEN_SIZE, M)
    for name, a, r in zip(names, outs, refs):
        assert jnp.allclose(a, r, rtol=5e-2, atol=2e-2), \
            (name, float(jnp.max(jnp.abs(a - r))))

    print("KERNEL_OK")
</pallas_src>

<mosaic_0001>
module attributes {stable_mosaic.version = 11 : i64} {
  func.func @_start_model_kernel(%arg0: memref<64x32xf32, #tpu.memory_space<vmem>>, %arg1: memref<384x128xbf16, #tpu.memory_space<vmem>>, %arg2: memref<328x128xf32, #tpu.memory_space<vmem>>, %arg3: memref<2x128xf32, #tpu.memory_space<vmem>>) attributes {dimension_semantics = [], scalar_prefetch = 0 : i64, scratch_operands = 0 : i64, tpu.core_type = #tpu.core_type<tc>} {
    %c0 = arith.constant 0 : index
    %c0_0 = arith.constant 0 : index
    %0 = vector.load %arg0[%c0, %c0_0] : memref<64x32xf32, #tpu.memory_space<vmem>>, vector<64x32xf32>
    %c0_1 = arith.constant 0 : index
    %c0_2 = arith.constant 0 : index
    %1 = vector.load %arg1[%c0_1, %c0_2] : memref<384x128xbf16, #tpu.memory_space<vmem>>, vector<32x128xbf16>
    %2 = arith.truncf %0 : vector<64x32xf32> to vector<64x32xbf16>
    %cst = arith.constant dense<0.000000e+00> : vector<64x128xf32>
    %3 = tpu.matmul %2, %1, %cst {dimension_numbers = #tpu.dot_dimension_numbers<[1], [0], [0], [1], [0, 0, 1, 1], [], []>} : vector<64x32xbf16>, vector<32x128xbf16>, vector<64x128xf32> -> vector<64x128xf32>
    %4 = vector.extract_strided_slice %3 {offsets = [0, 0], sizes = [64, 64], strides = [1, 1]} : vector<64x128xf32> to vector<64x64xf32>
    %5 = vector.extract_strided_slice %3 {offsets = [0, 64], sizes = [64, 64], strides = [1, 1]} : vector<64x128xf32> to vector<64x64xf32>
    %6 = tpu.concatenate %4, %5 in 0 : vector<64x64xf32>, vector<64x64xf32> -> vector<128x64xf32>
    %c32 = arith.constant 32 : index
    %c0_3 = arith.constant 0 : index
    %7 = vector.load %arg1[%c32, %c0_3] : memref<384x128xbf16, #tpu.memory_space<vmem>>, vector<32x128xbf16>
    %8 = arith.truncf %6 : vector<128x64xf32> to vector<128x64xbf16>
    %cst_4 = arith.constant dense<0.000000e+00> : vector<32x64xf32>
    %9 = tpu.matmul %7, %8, %cst_4 {dimension_numbers = #tpu.dot_dimension_numbers<[1], [0], [0], [1], [0, 0, 1, 1], [], []>} : vector<32x128xbf16>, vector<128x64xbf16>, vector<32x64xf32> -> vector<32x64xf32>
    %cst_5 = arith.constant dense<0.000000e+00> : vector<64xf32>
    %10 = vector.multi_reduction <add>, %9, %cst_5 [0] : vector<32x64xf32> to vector<64xf32>
    %11 = vector.shape_cast %10 : vector<64xf32> to vector<1x64xf32>
    %12 = arith.mulf %9, %9 : vector<32x64xf32>
    %cst_6 = arith.constant dense<0.000000e+00> : vector<64xf32>
    %13 = vector.multi_reduction <add>, %12, %cst_6 [0] : vector<32x64xf32> to vector<64xf32>
    %14 = vector.shape_cast %13 : vector<64xf32> to vector<1x64xf32>
    %15 = tpu.concatenate %11, %14 in 0 : vector<1x64xf32>, vector<1x64xf32> -> vector<2x64xf32>
    %c0_7 = arith.constant 0 : index
    %c0_8 = arith.constant 0 : index
    %16 = vector.load %arg2[%c0_7, %c0_8] : memref<328x128xf32, #tpu.memory_space<vmem>>, vector<64x64xf32>
    %cst_9 = arith.constant dense<0.000000e+00> : vector<2x64xf32>
    %17 = tpu.matmul %15, %16, %cst_9 {dimension_numbers = #tpu.dot_dimension_numbers<[1], [0], [0], [1], [0, 0, 1, 1], [], []>} : vector<2x64xf32>, vector<64x64xf32>, vector<2x64xf32> -> vector<2x64xf32>
    %18 = vector.extract_strided_slice %17 {offsets = [0, 0], sizes = [1, 64], strides = [1, 1]} : vector<2x64xf32> to vector<1x64xf32>
    %19 = vector.extract_strided_slice %17 {offsets = [1, 0], sizes = [1, 64], strides = [1, 1]} : vector<2x64xf32> to vector<1x64xf32>
    %20 = arith.mulf %18, %18 : vector<1x64xf32>
    %21 = arith.subf %19, %20 : vector<1x64xf32>
    %cst_10 = arith.constant 0.000000e+00 : f32
    %22 = vector.broadcast %cst_10 : f32 to vector<1x64xf32>
    %23 = arith.maximumf %21, %22 : vector<1x64xf32>
    %cst_11 = arith.constant 9.99999974E-6 : f32
    %24 = vector.broadcast %cst_11 : f32 to vector<1x64xf32>
    %25 = arith.addf %23, %24 : vector<1x64xf32>
    %26 = math.rsqrt %25 : vector<1x64xf32>
    %c64 = arith.constant 64 : index
    %c0_12 = arith.constant 0 : index
    %27 = vector.load %arg2[%c64, %c0_12] : memref<328x128xf32, #tpu.memory_space<vmem>>, vector<1x64xf32>
    %c65 = arith.constant 65 : index
    %c0_13 = arith.constant 0 : index
    %28 = vector.load %arg2[%c65, %c0_13] : memref<328x128xf32, #tpu.memory_space<vmem>>, vector<1x64xf32>
    %29 = vector.broadcast %18 : vector<1x64xf32> to vector<32x64xf32>
    %30 = arith.subf %9, %29 : vector<32x64xf32>
    %31 = arith.mulf %26, %27 : vector<1x64xf32>
    %32 = vector.broadcast %31 : vector<1x64xf32> to vector<32x64xf32>
    %33 = arith.mulf %30, %32 : vector<32x64xf32>
    %34 = vector.broadcast %28 : vector<1x64xf32> to vector<32x64xf32>
    %35 = arith.addf %33, %34 : vector<32x64xf32>
    %cst_14 = arith.constant 0.000000e+00 : f32
    %36 = vector.broadcast %cst_14 : f32 to vector<32x64xf32>
    %37 = arith.maximumf %35, %36 : vector<32x64xf32>
    %c64_15 = arith.constant 64 : index
    %c0_16 = arith.constant 0 : index
    %38 = vector.load %arg1[%c64_15, %c0_16] : memref<384x128xbf16, #tpu.memory_space<vmem>>, vector<64x120xbf16>
    %39 = arith.truncf %37 : vector<32x64xf32> to vector<32x64xbf16>
    %cst_17 = arith.constant dense<0.000000e+00> : vector<32x120xf32>
    %40 = tpu.matmul %39, %38, %cst_17 {dimension_numbers = #tpu.dot_dimension_numbers<[1], [0], [0], [1], [0, 0, 1, 1], [], []>} : vector<32x64xbf16>, vector<64x120xbf16>, vector<32x120xf32> -> vector<32x120xf32>
    %41 = vector.extract_strided_slice %40 {offsets = [0, 0], sizes = [15, 60], strides = [1, 1]} : vector<32x120xf32> to vector<15x60xf32>
    %42 = vector.extract_strided_slice %40 {offsets = [1, 60], sizes = [15, 60], strides = [1, 1]} : vector<32x120xf32> to vector<15x60xf32>
    %43 = arith.addf %41, %42 : vector<15x60xf32>
    %44 = vector.extract_strided_slice %40 {offsets = [16, 0], sizes = [15, 60], strides = [1, 1]} : vector<32x120xf32> to vector<15x60xf32>
    %45 = vector.extract_strided_slice %40 {offsets = [17, 60], sizes = [15, 60], strides = [1, 1]} : vector<32x120xf32> to vector<15x60xf32>
    %46 = arith.addf %44, %45 : vector<15x60xf32>
    %47 = tpu.concatenate %43, %46 in 0 : vector<15x60xf32>, vector<15x60xf32> -> vector<30x60xf32>
    %cst_18 = arith.constant dense<0.000000e+00> : vector<60xf32>
    %48 = vector.multi_reduction <add>, %47, %cst_18 [0] : vector<30x60xf32> to vector<60xf32>
    %49 = vector.shape_cast %48 : vector<60xf32> to vector<1x60xf32>
    %50 = arith.mulf %47, %47 : vector<30x60xf32>
    %cst_19 = arith.constant dense<0.000000e+00> : vector<60xf32>
    %51 = vector.multi_reduction <add>, %50, %cst_19 [0] : vector<30x60xf32> to vector<60xf32>
    %52 = vector.shape_cast %51 : vector<60xf32> to vector<1x60xf32>
    %53 = tpu.concatenate %49, %52 in 0 : vector<1x60xf32>, vector<1x60xf32> -> vector<2x60xf32>
    %c72 = arith.constant 72 : index
    %c0_20 = arith.constant 0 : index
    %54 = vector.load %arg2[%c72, %c0_20] : memref<328x128xf32, #tpu.memory_space<vmem>>, vector<60x60xf32>
    %cst_21 = arith.constant dense<0.000000e+00> : vector<2x60xf32>
    %55 = tpu.matmul %53, %54, %cst_21 {dimension_numbers = #tpu.dot_dimension_numbers<[1], [0], [0], [1], [0, 0, 1, 1], [], []>} : vector<2x60xf32>, vector<60x60xf32>, vector<2x60xf32> -> vector<2x60xf32>
    %56 = vector.extract_strided_slice %55 {offsets = [0, 0], sizes = [1, 60], strides = [1, 1]} : vector<2x60xf32> to vector<1x60xf32>
    %57 = vector.extract_strided_slice %55 {offsets = [1, 0], sizes = [1, 60], strides = [1, 1]} : vector<2x60xf32> to vector<1x60xf32>
    %58 = arith.mulf %56, %56 : vector<1x60xf32>
    %59 = arith.subf %57, %58 : vector<1x60xf32>
    %cst_22 = arith.constant 0.000000e+00 : f32
    %60 = vector.broadcast %cst_22 : f32 to vector<1x60xf32>
    %61 = arith.maximumf %59, %60 : vector<1x60xf32>
    %cst_23 = arith.constant 9.99999974E-6 : f32
    %62 = vector.broadcast %cst_23 : f32 to vector<1x60xf32>
    %63 = arith.addf %61, %62 : vector<1x60xf32>
    %64 = math.rsqrt %63 : vector<1x60xf32>
    %c136 = arith.constant 136 : index
    %c0_24 = arith.constant 0 : index
    %65 = vector.load %arg2[%c136, %c0_24] : memref<328x128xf32, #tpu.memory_space<vmem>>, vector<1x60xf32>
    %c137 = arith.constant 137 : index
    %c0_25 = arith.constant 0 : index
    %66 = vector.load %arg2[%c137, %c0_25] : memref<328x128xf32, #tpu.memory_space<vmem>>, vector<1x60xf32>
    %67 = vector.broadcast %56 : vector<1x60xf32> to vector<30x60xf32>
    %68 = arith.subf %47, %67 : vector<30x60xf32>
    %69 = arith.mulf %64, %65 : vector<1x60xf32>
    %70 = vector.broadcast %69 : vector<1x60xf32> to vector<30x60xf32>
    %71 = arith.mulf %68, %70 : vector<30x60xf32>
    %72 = vector.broadcast %66 : vector<1x60xf32> to vector<30x60xf32>
    %73 = arith.addf %71, %72 : vector<30x60xf32>
    %cst_26 = arith.constant 0.000000e+00 : f32
    %74 = vector.broadcast %cst_26 : f32 to vector<30x60xf32>
    %75 = arith.maximumf %73, %74 : vector<30x60xf32>
    %c128 = arith.constant 128 : index
    %c0_27 = arith.constant 0 : index
    %76 = vector.load %arg1[%c128, %c0_27] : memref<384x128xbf16, #tpu.memory_space<vmem>>, vector<60x112xbf16>
    %77 = arith.truncf %75 : vector<30x60xf32> to vector<30x60xbf16>
    %cst_28 = arith.constant dense<0.000000e+00> : vector<30x112xf32>
    %78 = tpu.matmul %77, %76, %cst_28 {dimension_numbers = #tpu.dot_dimension_numbers<[1], [0], [0], [1], [0, 0, 1, 1], [], []>} : vector<30x60xbf16>, vector<60x112xbf16>, vector<30x112xf32> -> vector<30x112xf32>
    %79 = vector.extract_strided_slice %78 {offsets = [0, 0], sizes = [30, 56], strides = [1, 1]} : vector<30x112xf32> to vector<30x56xf32>
    %80 = vector.extract_strided_slice %78 {offsets = [0, 56], sizes = [30, 56], strides = [1, 1]} : vector<30x112xf32> to vector<30x56xf32>
    %81 = tpu.concatenate %79, %80 in 0 : vector<30x56xf32>, vector<30x56xf32> -> vector<60x56xf32>
    %c192 = arith.constant 192 : index
    %c0_29 = arith.constant 0 : index
    %82 = vector.load %arg1[%c192, %c0_29] : memref<384x128xbf16, #tpu.memory_space<vmem>>, vector<14x60xbf16>
    %83 = arith.truncf %81 : vector<60x56xf32> to vector<60x56xbf16>
    %cst_30 = arith.constant dense<0.000000e+00> : vector<14x56xf32>
    %84 = tpu.matmul %82, %83, %cst_30 {dimension_numbers = #tpu.dot_dimension_numbers<[1], [0], [0], [1], [0, 0, 1, 1], [], []>} : vector<14x60xbf16>, vector<60x56xbf16>, vector<14x56xf32> -> vector<14x56xf32>
    %cst_31 = arith.constant dense<0.000000e+00> : vector<56xf32>
    %85 = vector.multi_reduction <add>, %84, %cst_31 [0] : vector<14x56xf32> to vector<56xf32>
    %86 = vector.shape_cast %85 : vector<56xf32> to vector<1x56xf32>
    %87 = arith.mulf %84, %84 : vector<14x56xf32>
    %cst_32 = arith.constant dense<0.000000e+00> : vector<56xf32>
    %88 = vector.multi_reduction <add>, %87, %cst_32 [0] : vector<14x56xf32> to vector<56xf32>
    %89 = vector.shape_cast %88 : vector<56xf32> to vector<1x56xf32>
    %90 = tpu.concatenate %86, %89 in 0 : vector<1x56xf32>, vector<1x56xf32> -> vector<2x56xf32>
    %c144 = arith.constant 144 : index
    %c0_33 = arith.constant 0 : index
    %91 = vector.load %arg2[%c144, %c0_33] : memref<328x128xf32, #tpu.memory_space<vmem>>, vector<56x56xf32>
    %cst_34 = arith.constant dense<0.000000e+00> : vector<2x56xf32>
    %92 = tpu.matmul %90, %91, %cst_34 {dimension_numbers = #tpu.dot_dimension_numbers<[1], [0], [0], [1], [0, 0, 1, 1], [], []>} : vector<2x56xf32>, vector<56x56xf32>, vector<2x56xf32> -> vector<2x56xf32>
    %93 = vector.extract_strided_slice %92 {offsets = [0, 0], sizes = [1, 56], strides = [1, 1]} : vector<2x56xf32> to vector<1x56xf32>
    %94 = vector.extract_strided_slice %92 {offsets = [1, 0], sizes = [1, 56], strides = [1, 1]} : vector<2x56xf32> to vector<1x56xf32>
    %95 = arith.mulf %93, %93 : vector<1x56xf32>
    %96 = arith.subf %94, %95 : vector<1x56xf32>
    %cst_35 = arith.constant 0.000000e+00 : f32
    %97 = vector.broadcast %cst_35 : f32 to vector<1x56xf32>
    %98 = arith.maximumf %96, %97 : vector<1x56xf32>
    %cst_36 = arith.constant 9.99999974E-6 : f32
    %99 = vector.broadcast %cst_36 : f32 to vector<1x56xf32>
    %100 = arith.addf %98, %99 : vector<1x56xf32>
    %101 = math.rsqrt %100 : vector<1x56xf32>
    %c200 = arith.constant 200 : index
    %c0_37 = arith.constant 0 : index
    %102 = vector.load %arg2[%c200, %c0_37] : memref<328x128xf32, #tpu.memory_space<vmem>>, vector<1x56xf32>
    %c201 = arith.constant 201 : index
    %c0_38 = arith.constant 0 : index
    %103 = vector.load %arg2[%c201, %c0_38] : memref<328x128xf32, #tpu.memory_space<vmem>>, vector<1x56xf32>
    %104 = vector.broadcast %93 : vector<1x56xf32> to vector<14x56xf32>
    %105 = arith.subf %84, %104 : vector<14x56xf32>
    %106 = arith.mulf %101, %102 : vector<1x56xf32>
    %107 = vector.broadcast %106 : vector<1x56xf32> to vector<14x56xf32>
    %108 = arith.mulf %105, %107 : vector<14x56xf32>
    %109 = vector.broadcast %103 : vector<1x56xf32> to vector<14x56xf32>
    %110 = arith.addf %108, %109 : vector<14x56xf32>
    %cst_39 = arith.constant 0.000000e+00 : f32
    %111 = vector.broadcast %cst_39 : f32 to vector<14x56xf32>
    %112 = arith.maximumf %110, %111 : vector<14x56xf32>
    %c208 = arith.constant 208 : index
    %c0_40 = arith.constant 0 : index
    %113 = vector.load %arg1[%c208, %c0_40] : memref<384x128xbf16, #tpu.memory_space<vmem>>, vector<56x96xbf16>
    %114 = arith.truncf %112 : vector<14x56xf32> to vector<14x56xbf16>
    %cst_41 = arith.constant dense<0.000000e+00> : vector<14x96xf32>
    %115 = tpu.matmul %114, %113, %cst_41 {dimension_numbers = #tpu.dot_dimension_numbers<[1], [0], [0], [1], [0, 0, 1, 1], [], []>} : vector<14x56xbf16>, vector<56x96xbf16>, vector<14x96xf32> -> vector<14x96xf32>
    %116 = vector.extract_strided_slice %115 {offsets = [0, 0], sizes = [6, 48], strides = [1, 1]} : vector<14x96xf32> to vector<6x48xf32>
    %117 = vector.extract_strided_slice %115 {offsets = [1, 48], sizes = [6, 48], strides = [1, 1]} : vector<14x96xf32> to vector<6x48xf32>
    %118 = arith.addf %116, %117 : vector<6x48xf32>
    %119 = vector.extract_strided_slice %115 {offsets = [7, 0], sizes = [6, 48], strides = [1, 1]} : vector<14x96xf32> to vector<6x48xf32>
    %120 = vector.extract_strided_slice %115 {offsets = [8, 48], sizes = [6, 48], strides = [1, 1]} : vector<14x96xf32> to vector<6x48xf32>
    %121 = arith.addf %119, %120 : vector<6x48xf32>
    %122 = tpu.concatenate %118, %121 in 0 : vector<6x48xf32>, vector<6x48xf32> -> vector<12x48xf32>
    %cst_42 = arith.constant dense<0.000000e+00> : vector<48xf32>
    %123 = vector.multi_reduction <add>, %122, %cst_42 [0] : vector<12x48xf32> to vector<48xf32>
    %124 = vector.shape_cast %123 : vector<48xf32> to vector<1x48xf32>
    %125 = arith.mulf %122, %122 : vector<12x48xf32>
    %cst_43 = arith.constant dense<0.000000e+00> : vector<48xf32>
    %126 = vector.multi_reduction <add>, %125, %cst_43 [0] : vector<12x48xf32> to vector<48xf32>
    %127 = vector.shape_cast %126 : vector<48xf32> to vector<1x48xf32>
    %128 = tpu.concatenate %124, %127 in 0 : vector<1x48xf32>, vector<1x48xf32> -> vector<2x48xf32>
    %c208_44 = arith.constant 208 : index
    %c0_45 = arith.constant 0 : index
    %129 = vector.load %arg2[%c208_44, %c0_45] : memref<328x128xf32, #tpu.memory_space<vmem>>, vector<48x48xf32>
    %cst_46 = arith.constant dense<0.000000e+00> : vector<2x48xf32>
    %130 = tpu.matmul %128, %129, %cst_46 {dimension_numbers = #tpu.dot_dimension_numbers<[1], [0], [0], [1], [0, 0, 1, 1], [], []>} : vector<2x48xf32>, vector<48x48xf32>, vector<2x48xf32> -> vector<2x48xf32>
    %131 = vector.extract_strided_slice %130 {offsets = [0, 0], sizes = [1, 48], strides = [1, 1]} : vector<2x48xf32> to vector<1x48xf32>
    %132 = vector.extract_strided_slice %130 {offsets = [1, 0], sizes = [1, 48], strides = [1, 1]} : vector<2x48xf32> to vector<1x48xf32>
    %133 = arith.mulf %131, %131 : vector<1x48xf32>
    %134 = arith.subf %132, %133 : vector<1x48xf32>
    %cst_47 = arith.constant 0.000000e+00 : f32
    %135 = vector.broadcast %cst_47 : f32 to vector<1x48xf32>
    %136 = arith.maximumf %134, %135 : vector<1x48xf32>
    %cst_48 = arith.constant 9.99999974E-6 : f32
    %137 = vector.broadcast %cst_48 : f32 to vector<1x48xf32>
    %138 = arith.addf %136, %137 : vector<1x48xf32>
    %139 = math.rsqrt %138 : vector<1x48xf32>
    %c256 = arith.constant 256 : index
    %c0_49 = arith.constant 0 : index
    %140 = vector.load %arg2[%c256, %c0_49] : memref<328x128xf32, #tpu.memory_space<vmem>>, vector<1x48xf32>
    %c257 = arith.constant 257 : index
    %c0_50 = arith.constant 0 : index
    %141 = vector.load %arg2[%c257, %c0_50] : memref<328x128xf32, #tpu.memory_space<vmem>>, vector<1x48xf32>
    %142 = vector.broadcast %131 : vector<1x48xf32> to vector<12x48xf32>
    %143 = arith.subf %122, %142 : vector<12x48xf32>
    %144 = arith.mulf %139, %140 : vector<1x48xf32>
    %145 = vector.broadcast %144 : vector<1x48xf32> to vector<12x48xf32>
    %146 = arith.mulf %143, %145 : vector<12x48xf32>
    %147 = vector.broadcast %141 : vector<1x48xf32> to vector<12x48xf32>
    %148 = arith.addf %146, %147 : vector<12x48xf32>
    %cst_51 = arith.constant 0.000000e+00 : f32
    %149 = vector.broadcast %cst_51 : f32 to vector<12x48xf32>
    %150 = arith.maximumf %148, %149 : vector<12x48xf32>
    %c272 = arith.constant 272 : index
    %c0_52 = arith.constant 0 : index
    %151 = vector.load %arg1[%c272, %c0_52] : memref<384x128xbf16, #tpu.memory_space<vmem>>, vector<48x48xbf16>
    %152 = arith.truncf %150 : vector<12x48xf32> to vector<12x48xbf16>
    %cst_53 = arith.constant dense<0.000000e+00> : vector<12x48xf32>
    %153 = tpu.matmul %152, %151, %cst_53 {dimension_numbers = #tpu.dot_dimension_numbers<[1], [0], [0], [1], [0, 0, 1, 1], [], []>} : vector<12x48xbf16>, vector<48x48xbf16>, vector<12x48xf32> -> vector<12x48xf32>
    %154 = vector.extract_strided_slice %153 {offsets = [0, 0], sizes = [12, 24], strides = [1, 1]} : vector<12x48xf32> to vector<12x24xf32>
    %155 = vector.extract_strided_slice %153 {offsets = [0, 24], sizes = [12, 24], strides = [1, 1]} : vector<12x48xf32> to vector<12x24xf32>
    %156 = tpu.concatenate %154, %155 in 0 : vector<12x24xf32>, vector<12x24xf32> -> vector<24x24xf32>
    %c320 = arith.constant 320 : index
    %c0_54 = arith.constant 0 : index
    %157 = vector.load %arg1[%c320, %c0_54] : memref<384x128xbf16, #tpu.memory_space<vmem>>, vector<6x24xbf16>
    %158 = arith.truncf %156 : vector<24x24xf32> to vector<24x24xbf16>
    %cst_55 = arith.constant dense<0.000000e+00> : vector<6x24xf32>
    %159 = tpu.matmul %157, %158, %cst_55 {dimension_numbers = #tpu.dot_dimension_numbers<[1], [0], [0], [1], [0, 0, 1, 1], [], []>} : vector<6x24xbf16>, vector<24x24xbf16>, vector<6x24xf32> -> vector<6x24xf32>
    %cst_56 = arith.constant dense<0.000000e+00> : vector<24xf32>
    %160 = vector.multi_reduction <add>, %159, %cst_56 [0] : vector<6x24xf32> to vector<24xf32>
    %161 = vector.shape_cast %160 : vector<24xf32> to vector<1x24xf32>
    %162 = arith.mulf %159, %159 : vector<6x24xf32>
    %cst_57 = arith.constant dense<0.000000e+00> : vector<24xf32>
    %163 = vector.multi_reduction <add>, %162, %cst_57 [0] : vector<6x24xf32> to vector<24xf32>
    %164 = vector.shape_cast %163 : vector<24xf32> to vector<1x24xf32>
    %165 = tpu.concatenate %161, %164 in 0 : vector<1x24xf32>, vector<1x24xf32> -> vector<2x24xf32>
    %c264 = arith.constant 264 : index
    %c0_58 = arith.constant 0 : index
    %166 = vector.load %arg2[%c264, %c0_58] : memref<328x128xf32, #tpu.memory_space<vmem>>, vector<24x24xf32>
    %cst_59 = arith.constant dense<0.000000e+00> : vector<2x24xf32>
    %167 = tpu.matmul %165, %166, %cst_59 {dimension_numbers = #tpu.dot_dimension_numbers<[1], [0], [0], [1], [0, 0, 1, 1], [], []>} : vector<2x24xf32>, vector<24x24xf32>, vector<2x24xf32> -> vector<2x24xf32>
    %168 = vector.extract_strided_slice %167 {offsets = [0, 0], sizes = [1, 24], strides = [1, 1]} : vector<2x24xf32> to vector<1x24xf32>
    %169 = vector.extract_strided_slice %167 {offsets = [1, 0], sizes = [1, 24], strides = [1, 1]} : vector<2x24xf32> to vector<1x24xf32>
    %170 = arith.mulf %168, %168 : vector<1x24xf32>
    %171 = arith.subf %169, %170 : vector<1x24xf32>
    %cst_60 = arith.constant 0.000000e+00 : f32
    %172 = vector.broadcast %cst_60 : f32 to vector<1x24xf32>
    %173 = arith.maximumf %171, %172 : vector<1x24xf32>
    %cst_61 = arith.constant 9.99999974E-6 : f32
    %174 = vector.broadcast %cst_61 : f32 to vector<1x24xf32>
    %175 = arith.addf %173, %174 : vector<1x24xf32>
    %176 = math.rsqrt %175 : vector<1x24xf32>
    %c288 = arith.constant 288 : index
    %c0_62 = arith.constant 0 : index
    %177 = vector.load %arg2[%c288, %c0_62] : memref<328x128xf32, #tpu.memory_space<vmem>>, vector<1x24xf32>
    %c289 = arith.constant 289 : index
    %c0_63 = arith.constant 0 : index
    %178 = vector.load %arg2[%c289, %c0_63] : memref<328x128xf32, #tpu.memory_space<vmem>>, vector<1x24xf32>
    %179 = vector.broadcast %168 : vector<1x24xf32> to vector<6x24xf32>
    %180 = arith.subf %159, %179 : vector<6x24xf32>
    %181 = arith.mulf %176, %177 : vector<1x24xf32>
    %182 = vector.broadcast %181 : vector<1x24xf32> to vector<6x24xf32>
    %183 = arith.mulf %180, %182 : vector<6x24xf32>
    %184 = vector.broadcast %178 : vector<1x24xf32> to vector<6x24xf32>
    %185 = arith.addf %183, %184 : vector<6x24xf32>
    %cst_64 = arith.constant 0.000000e+00 : f32
    %186 = vector.broadcast %cst_64 : f32 to vector<6x24xf32>
    %187 = arith.maximumf %185, %186 : vector<6x24xf32>
    %c336 = arith.constant 336 : index
    %c0_65 = arith.constant 0 : index
    %188 = vector.load %arg1[%c336, %c0_65] : memref<384x128xbf16, #tpu.memory_space<vmem>>, vector<24x32xbf16>
    %189 = arith.truncf %187 : vector<6x24xf32> to vector<6x24xbf16>
    %cst_66 = arith.constant dense<0.000000e+00> : vector<6x32xf32>
    %190 = tpu.matmul %189, %188, %cst_66 {dimension_numbers = #tpu.dot_dimension_numbers<[1], [0], [0], [1], [0, 0, 1, 1], [], []>} : vector<6x24xbf16>, vector<24x32xbf16>, vector<6x32xf32> -> vector<6x32xf32>
    %191 = vector.extract_strided_slice %190 {offsets = [0, 0], sizes = [2, 16], strides = [1, 1]} : vector<6x32xf32> to vector<2x16xf32>
    %192 = vector.extract_strided_slice %190 {offsets = [1, 16], sizes = [2, 16], strides = [1, 1]} : vector<6x32xf32> to vector<2x16xf32>
    %193 = arith.addf %191, %192 : vector<2x16xf32>
    %194 = vector.extract_strided_slice %190 {offsets = [3, 0], sizes = [2, 16], strides = [1, 1]} : vector<6x32xf32> to vector<2x16xf32>
    %195 = vector.extract_strided_slice %190 {offsets = [4, 16], sizes = [2, 16], strides = [1, 1]} : vector<6x32xf32> to vector<2x16xf32>
    %196 = arith.addf %194, %195 : vector<2x16xf32>
    %197 = tpu.concatenate %193, %196 in 0 : vector<2x16xf32>, vector<2x16xf32> -> vector<4x16xf32>
    %cst_67 = arith.constant dense<0.000000e+00> : vector<16xf32>
    %198 = vector.multi_reduction <add>, %197, %cst_67 [0] : vector<4x16xf32> to vector<16xf32>
    %199 = vector.shape_cast %198 : vector<16xf32> to vector<1x16xf32>
    %200 = arith.mulf %197, %197 : vector<4x16xf32>
    %cst_68 = arith.constant dense<0.000000e+00> : vector<16xf32>
    %201 = vector.multi_reduction <add>, %200, %cst_68 [0] : vector<4x16xf32> to vector<16xf32>
    %202 = vector.shape_cast %201 : vector<16xf32> to vector<1x16xf32>
    %203 = tpu.concatenate %199, %202 in 0 : vector<1x16xf32>, vector<1x16xf32> -> vector<2x16xf32>
    %c296 = arith.constant 296 : index
    %c0_69 = arith.constant 0 : index
    %204 = vector.load %arg2[%c296, %c0_69] : memref<328x128xf32, #tpu.memory_space<vmem>>, vector<16x16xf32>
    %cst_70 = arith.constant dense<0.000000e+00> : vector<2x16xf32>
    %205 = tpu.matmul %203, %204, %cst_70 {dimension_numbers = #tpu.dot_dimension_numbers<[1], [0], [0], [1], [0, 0, 1, 1], [], []>} : vector<2x16xf32>, vector<16x16xf32>, vector<2x16xf32> -> vector<2x16xf32>
    %206 = vector.extract_strided_slice %205 {offsets = [0, 0], sizes = [1, 16], strides = [1, 1]} : vector<2x16xf32> to vector<1x16xf32>
    %207 = vector.extract_strided_slice %205 {offsets = [1, 0], sizes = [1, 16], strides = [1, 1]} : vector<2x16xf32> to vector<1x16xf32>
    %208 = arith.mulf %206, %206 : vector<1x16xf32>
    %209 = arith.subf %207, %208 : vector<1x16xf32>
    %cst_71 = arith.constant 0.000000e+00 : f32
    %210 = vector.broadcast %cst_71 : f32 to vector<1x16xf32>
    %211 = arith.maximumf %209, %210 : vector<1x16xf32>
    %cst_72 = arith.constant 9.99999974E-6 : f32
    %212 = vector.broadcast %cst_72 : f32 to vector<1x16xf32>
    %213 = arith.addf %211, %212 : vector<1x16xf32>
    %214 = math.rsqrt %213 : vector<1x16xf32>
    %c312 = arith.constant 312 : index
    %c0_73 = arith.constant 0 : index
    %215 = vector.load %arg2[%c312, %c0_73] : memref<328x128xf32, #tpu.memory_space<vmem>>, vector<1x16xf32>
    %c313 = arith.constant 313 : index
    %c0_74 = arith.constant 0 : index
    %216 = vector.load %arg2[%c313, %c0_74] : memref<328x128xf32, #tpu.memory_space<vmem>>, vector<1x16xf32>
    %217 = vector.broadcast %206 : vector<1x16xf32> to vector<4x16xf32>
    %218 = arith.subf %197, %217 : vector<4x16xf32>
    %219 = arith.mulf %214, %215 : vector<1x16xf32>
    %220 = vector.broadcast %219 : vector<1x16xf32> to vector<4x16xf32>
    %221 = arith.mulf %218, %220 : vector<4x16xf32>
    %222 = vector.broadcast %216 : vector<1x16xf32> to vector<4x16xf32>
    %223 = arith.addf %221, %222 : vector<4x16xf32>
    %cst_75 = arith.constant 0.000000e+00 : f32
    %224 = vector.broadcast %cst_75 : f32 to vector<4x16xf32>
    %225 = arith.maximumf %223, %224 : vector<4x16xf32>
    %c368 = arith.constant 368 : index
    %c0_76 = arith.constant 0 : index
    %226 = vector.load %arg1[%c368, %c0_76] : memref<384x128xbf16, #tpu.memory_space<vmem>>, vector<16x128xbf16>
    %227 = arith.truncf %225 : vector<4x16xf32> to vector<4x16xbf16>
    %cst_77 = arith.constant dense<0.000000e+00> : vector<4x128xf32>
    %228 = tpu.matmul %227, %226, %cst_77 {dimension_numbers = #tpu.dot_dimension_numbers<[1], [0], [0], [1], [0, 0, 1, 1], [], []>} : vector<4x16xbf16>, vector<16x128xbf16>, vector<4x128xf32> -> vector<4x128xf32>
    %229 = vector.extract_strided_slice %228 {offsets = [0, 0], sizes = [2, 128], strides = [1, 1]} : vector<4x128xf32> to vector<2x128xf32>
    %cst_78 = arith.constant dense<0.000000e+00> : vector<128xf32>
    %230 = vector.multi_reduction <add>, %229, %cst_78 [0] : vector<2x128xf32> to vector<128xf32>
    %231 = vector.shape_cast %230 : vector<128xf32> to vector<1x128xf32>
    %232 = vector.extract_strided_slice %228 {offsets = [2, 0], sizes = [2, 128], strides = [1, 1]} : vector<4x128xf32> to vector<2x128xf32>
    %cst_79 = arith.constant dense<0.000000e+00> : vector<128xf32>
    %233 = vector.multi_reduction <add>, %232, %cst_79 [0] : vector<2x128xf32> to vector<128xf32>
    %234 = vector.shape_cast %233 : vector<128xf32> to vector<1x128xf32>
    %235 = tpu.concatenate %231, %234 in 0 : vector<1x128xf32>, vector<1x128xf32> -> vector<2x128xf32>
    %c320_80 = arith.constant 320 : index
    %c0_81 = arith.constant 0 : index
    %236 = vector.load %arg2[%c320_80, %c0_81] : memref<328x128xf32, #tpu.memory_space<vmem>>, vector<1x128xf32>
    %237 = vector.broadcast %236 : vector<1x128xf32> to vector<2x128xf32>
    %238 = arith.addf %235, %237 : vector<2x128xf32>
    %c321 = arith.constant 321 : index
    %c0_82 = arith.constant 0 : index
    %239 = vector.load %arg2[%c321, %c0_82] : memref<328x128xf32, #tpu.memory_space<vmem>>, vector<1x128xf32>
    %240 = vector.shape_cast %239 : vector<1x128xf32> to vector<1x128xf32>
    %241 = vector.broadcast %240 : vector<1x128xf32> to vector<2x128xf32>
    %cst_83 = arith.constant 5.000000e-01 : f32
    %242 = vector.broadcast %cst_83 : f32 to vector<2x128xf32>
    %243 = arith.cmpf ogt, %241, %242 : vector<2x128xf32>
    %c322 = arith.constant 322 : index
    %c0_84 = arith.constant 0 : index
    %244 = vector.load %arg2[%c322, %c0_84] : memref<328x128xf32, #tpu.memory_space<vmem>>, vector<1x128xf32>
    %245 = vector.shape_cast %244 : vector<1x128xf32> to vector<1x128xf32>
    %246 = vector.broadcast %245 : vector<1x128xf32> to vector<2x128xf32>
    %cst_85 = arith.constant 5.000000e-01 : f32
    %247 = vector.broadcast %cst_85 : f32 to vector<2x128xf32>
    %248 = arith.cmpf ogt, %246, %247 : vector<2x128xf32>
    %c323 = arith.constant 323 : index
    %c0_86 = arith.constant 0 : index
    %249 = vector.load %arg2[%c323, %c0_86] : memref<328x128xf32, #tpu.memory_space<vmem>>, vector<1x128xf32>
    %250 = vector.shape_cast %249 : vector<1x128xf32> to vector<1x128xf32>
    %251 = vector.broadcast %250 : vector<1x128xf32> to vector<2x128xf32>
    %cst_87 = arith.constant 5.000000e-01 : f32
    %252 = vector.broadcast %cst_87 : f32 to vector<2x128xf32>
    %253 = arith.cmpf ogt, %251, %252 : vector<2x128xf32>
    %cst_88 = arith.constant -1.000000e+30 : f32
    %254 = vector.broadcast %cst_88 : f32 to vector<2x128xf32>
    %255 = arith.select %243, %238, %254 : vector<2x128xi1>, vector<2x128xf32>
    %cst_89 = arith.constant dense<0xFF800000> : vector<2xf32>
    %256 = vector.multi_reduction <maximumf>, %255, %cst_89 [1] : vector<2x128xf32> to vector<2xf32>
    %257 = vector.shape_cast %256 : vector<2xf32> to vector<2x1xf32>
    %258 = vector.broadcast %257 : vector<2x1xf32> to vector<2x128xf32>
    %259 = arith.subf %238, %258 : vector<2x128xf32>
    %260 = math.exp %259 : vector<2x128xf32>
    %cst_90 = arith.constant 0.000000e+00 : f32
    %261 = vector.broadcast %cst_90 : f32 to vector<2x128xf32>
    %262 = arith.select %243, %260, %261 : vector<2x128xi1>, vector<2x128xf32>
    %cst_91 = arith.constant dense<0.000000e+00> : vector<2xf32>
    %263 = vector.multi_reduction <add>, %262, %cst_91 [1] : vector<2x128xf32> to vector<2xf32>
    %264 = vector.shape_cast %263 : vector<2xf32> to vector<2x1xf32>
    %265 = vector.broadcast %264 : vector<2x1xf32> to vector<2x128xf32>
    %266 = arith.divf %260, %265 : vector<2x128xf32>
    %267 = arith.select %243, %266, %238 : vector<2x128xi1>, vector<2x128xf32>
    %268 = math.exp %257 : vector<2x1xf32>
    %269 = vector.broadcast %268 : vector<2x1xf32> to vector<2x128xf32>
    %270 = arith.mulf %260, %269 : vector<2x128xf32>
    %271 = arith.select %248, %270, %267 : vector<2x128xi1>, vector<2x128xf32>
    %272 = math.tanh %238 : vector<2x128xf32>
    %273 = arith.select %253, %272, %271 : vector<2x128xi1>, vector<2x128xf32>
    %c0_92 = arith.constant 0 : index
    %c0_93 = arith.constant 0 : index
    %274 = vector.load %arg3[%c0_92, %c0_93] : memref<2x128xf32, #tpu.memory_space<vmem>>, vector<2x128xf32>
    tpu.vector_store %arg3[%c0_92, %c0_93], %273 {strides = array<i32>} : memref<2x128xf32, #tpu.memory_space<vmem>>, vector<2x128xf32>,
    return
  }
}

</mosaic_0001>

<llo_original>
// kernel: forward.1
$region0: #{forward.1}
  #allocation0 [shape = 'u32[]', space=smem, size = 0x4, offset = 0x4, fixed_abs, tag = 'smem constant byte address 0x4 - core index']
  #allocation1 [shape = 'u32[144,128]{1,0:T(1,128)}', space=vmem, size = 0x12000, scoped, tag = 'internal scratch']
  %s0 = inlined_call_operand.hbm [shape: f32[64,32], index: 0, kind: input, shape index: {}]
  %s1 = inlined_call_operand.hbm [shape: bf16[384,128], index: 1, kind: input, shape index: {}]
  %s2 = inlined_call_operand.hbm [shape: f32[328,128], index: 2, kind: input, shape index: {}]
  %s3 = inlined_call_operand.vmem [shape: f32[2,128], index: 3, kind: output, shape index: {}]
  %s4 = sld [smem:[#allocation0]]
  $region34: #{forward.1} parent=0
    _
  %s6 = ssub.s32 1, %s4
  %s7 = scalar_select 0, %s6, %s4
  $region1: #{forward.1} parent=0
    #allocation2 [shape = 'u8[32768]{0}', space=vmem, size = 0x8000, scoped, tag = 'input window, operand 0, single buffered']
    #allocation3 [shape = 's32[1]{0}', space=sflag, size = 0x4, scoped, tag = 'scoped memory for forward.1']
    #allocation4 [shape = 'u8[98304]{0}', space=vmem, size = 0x18000, scoped, tag = 'input window, operand 1, single buffered']
    #allocation5 [shape = 's32[1]{0}', space=sflag, size = 0x4, scoped, tag = 'scoped memory for forward.1']
    #allocation6 [shape = 'u8[167936]{0}', space=vmem, size = 0x29000, scoped, tag = 'input window, operand 2, single buffered']
    %8 = vsyncpa [#allocation3], 0
    %9 = vsyncpa [#allocation5], 0
    // Predicated region
    $region2: #{forward.1} parent=1 // pred_check
      _
    $region3: #{forward.1} parent=1 // pred_check_branch
      %11 = sbr.rel (0) target = $region5
    $region4: #{forward.1} parent=1 // pred_region
      %s13 = ssub.s32 1024, 1024
      %14 = vsyncadd [#allocation3], %s13
      %s15 = sshll.u32 [#allocation2], 4
      %s16 = int_to_ptr.vmem [resolvable:$true] %s15
      %21 = dma.hbm_to_vmem [thread:$0]  %s0, 1024, %s16, [#allocation3], 128, 128, 8
    $region5: #{forward.1} parent=1 // pred_fallthru
      _
    // Predicated region
    $region6: #{forward.1} parent=1 // pred_check
      _
    $region7: #{forward.1} parent=1 // pred_check_branch
      %23 = sbr.rel (0) target = $region9
    $region8: #{forward.1} parent=1 // pred_region
      %s25 = ssub.s32 3072, 3072
      %26 = vsyncadd [#allocation5], %s25
      %s27 = sshll.u32 [#allocation4], 4
      %s28 = int_to_ptr.vmem [resolvable:$true] %s27
      %33 = dma.hbm_to_vmem [thread:$0]  %s1, 3072, %s28, [#allocation5], 64, 64, 4
    $region9: #{forward.1} parent=1 // pred_fallthru
      _
    // Predicated region
    $region10: #{forward.1} parent=1 // pred_check
      _
    $region11: #{forward.1} parent=1 // pred_check_branch
      %35 = sbr.rel (0) target = $region13
    $region12: #{forward.1} parent=1 // pred_region
      %s37 = ssub.s32 5248, 5248
      %38 = vsyncadd [#allocation5], %s37
      %s39 = sshll.u32 [#allocation6], 4
      %s40 = int_to_ptr.vmem [resolvable:$true] %s39
      %45 = dma.hbm_to_vmem [thread:$0]  %s2, 5248, %s40, [#allocation5], 128, 128, 8
    $region13: #{forward.1} parent=1 // pred_fallthru
      _
    // Predicated region
    $region14: #{forward.1} parent=1 // pred_check
      _
    $region15: #{forward.1} parent=1 // pred_check_branch
      %47 = sbr.rel (0) target = $region17
    $region16: #{forward.1} parent=1 // pred_region
      %48 = dma.done [#allocation3], 1024
    $region17: #{forward.1} parent=1 // pred_fallthru
      _
    // Predicated region
    $region18: #{forward.1} parent=1 // pred_check
      _
    $region19: #{forward.1} parent=1 // pred_check_branch
      %50 = sbr.rel (0) target = $region21
    $region20: #{forward.1} parent=1 // pred_region
      %51 = dma.done [#allocation5], 3072
    $region21: #{forward.1} parent=1 // pred_fallthru
      _
    // Predicated region
    $region22: #{forward.1} parent=1 // pred_check
      _
    $region23: #{forward.1} parent=1 // pred_check_branch
      %53 = sbr.rel (0) target = $region25
    $region24: #{forward.1} parent=1 // pred_region
      %54 = dma.done [#allocation5], 5248
    $region25: #{forward.1} parent=1 // pred_fallthru
      _
    %v56 = vld [vmem:[#allocation2] sm:$0xff]
    %v57 = vld [vmem:[#allocation2 + $0x8] sm:$0xff]
    %v58 = vld [vmem:[#allocation2 + $0x10] sm:$0xff]
    %v59 = vld [vmem:[#allocation2 + $0x18] sm:$0xff]
    %v60 = vld [vmem:[#allocation2 + $0x20] sm:$0xff]
    %v61 = vld [vmem:[#allocation2 + $0x28] sm:$0xff]
    %v62 = vld [vmem:[#allocation2 + $0x30] sm:$0xff]
    %v63 = vld [vmem:[#allocation2 + $0x38] sm:$0xff]
    %v64 = vld [vmem:[#allocation4] sm:$0xf]
    %v65 = vld [vmem:[#allocation4 + $0x4] sm:$0xf]
    %v66 = vld [vmem:[#allocation4 + $0x8] sm:$0xf]
    %v67 = vld [vmem:[#allocation4 + $0xc] sm:$0xf]
    %v68 = vpack.c.bf16 %v57, %v56
    %v69 = vpack.c.bf16 %v59, %v58
    %v70 = vpack.c.bf16 %v61, %v60
    %v71 = vpack.c.bf16 %v63, %v62
    %v76 = vunpack.c.l.b16 %v64
    %v77 = vunpack.c.l.b16 %v65
    %v78 = vunpack.c.l.b16 %v66
    %v79 = vunpack.c.l.b16 %v67
    %v80 = vpack.c.b16 %v77, %v76
    %v81 = vpack.c.b16 %v79, %v78
    %vm84 = vcmask 261120
    %v86 = vsel %vm84, %v68, 0
    %v89 = vsel %vm84, %v69, 0
    %v92 = vsel %vm84, %v70, 0
    %v95 = vsel %vm84, %v71, 0
    %97 = vmatprep.subr.bf16.mxu0 0
    %98 = vmatpush1.bf16.msra.mxu0 %v80
    %99 = vmatprep.subr.bf16.mxu0 0
    %100 = vmatpush1.bf16.msra.mxu0 %v81
    %101 = vmatprep.subr.bf16.mxu0 0
    %102 = vmatpush1.bf16.msra.mxu0 0
    %103 = vmatprep.subr.bf16.mxu0 0
    %104 = vmatpush1.bf16.msra.mxu0 0
    %105 = vmatprep.subr.bf16.mxu0 0
    %106 = vmatpush1.bf16.msra.mxu0 0
    %107 = vmatprep.subr.bf16.mxu0 0
    %108 = vmatpush1.bf16.msra.mxu0 0
    %109 = vmatprep.subr.bf16.mxu0 0
    %110 = vmatpush1.bf16.msra.mxu0 0
    %111 = vmatprep.subr.bf16.mxu0 0
    %112 = vmatpush1.bf16.msra.mxu0 0
    %113 = vmatprep.subr.bf16.mxu0 0
    %114 = vmatpush1.bf16.msra.mxu0 0
    %115 = vmatprep.subr.bf16.mxu0 0
    %116 = vmatpush1.bf16.msra.mxu0 0
    %117 = vmatprep.subr.bf16.mxu0 0
    %118 = vmatpush1.bf16.msra.mxu0 0
    %119 = vmatprep.subr.bf16.mxu0 0
    %120 = vmatpush1.bf16.msra.mxu0 0
    %121 = vmatprep.subr.bf16.mxu0 0
    %122 = vmatpush1.bf16.msra.mxu0 0
    %123 = vmatprep.subr.bf16.mxu0 0
    %124 = vmatpush1.bf16.msra.mxu0 0
    %125 = vmatprep.subr.bf16.mxu0 0
    %126 = vmatpush1.bf16.msra.mxu0 0
    %127 = vmatprep.subr.bf16.mxu0 0
    %128 = vmatpush1.bf16.msra.mxu0 0
    %129 = vmatprep.mubr.bf16.mxu0 0
    %130 = vmatmul.mubr.bf16.gmra.mrb[0].mxu0 %v86
    %v131 = vpop.f32.mrb[0].mxu0
    %v132 = vadd.f32 0.0, %v131
    %v133 = vpop.f32.mrb[0].mxu0
    %v134 = vpop.f32.mrb[0].mxu0
    %v135 = vadd.f32 0.0, %v134
    %v136 = vpop.f32.mrb[0].mxu0
    %137 = vmatprep.mubr.bf16.mxu0 0
    %138 = vmatmul.mubr.bf16.gmra.mrb[0].mxu0 %v89
    %v139 = vpop.f32.mrb[0].mxu0
    %v140 = vadd.f32 0.0, %v139
    %v141 = vpop.f32.mrb[0].mxu0
    %v142 = vpop.f32.mrb[0].mxu0
    %v143 = vadd.f32 0.0, %v142
    %v144 = vpop.f32.mrb[0].mxu0
    %145 = vmatprep.mubr.bf16.mxu0 0
    %146 = vmatmul.mubr.bf16.gmra.mrb[0].mxu0 %v92
    %v147 = vpop.f32.mrb[0].mxu0
    %v148 = vadd.f32 0.0, %v147
    %v149 = vpop.f32.mrb[0].mxu0
    %v150 = vpop.f32.mrb[0].mxu0
    %v151 = vadd.f32 0.0, %v150
    %v152 = vpop.f32.mrb[0].mxu0
    %153 = vmatprep.mubr.bf16.mxu0 0
    %154 = vmatmul.mubr.bf16.gmra.mrb[0].mxu0 %v95
    %v155 = vpop.f32.mrb[0].mxu0
    %v156 = vadd.f32 0.0, %v155
    %v157 = vpop.f32.mrb[0].mxu0
    %v158 = vpop.f32.mrb[0].mxu0
    %v159 = vadd.f32 0.0, %v158
    %v160 = vpop.f32.mrb[0].mxu0
    %161 = vdwg.mxu0
    %170 = vrot.lane.b32.xlu0 %v132, 64
    %v171 = vpop.permute.xlu0 %170
    %172 = vrot.lane.b32.xlu0 %v135, 64
    %v173 = vpop.permute.xlu0 %172
    %174 = vrot.lane.b32.xlu0 %v140, 64
    %v175 = vpop.permute.xlu0 %174
    %176 = vrot.lane.b32.xlu0 %v143, 64
    %v177 = vpop.permute.xlu0 %176
    %178 = vrot.lane.b32.xlu0 %v148, 64
    %v179 = vpop.permute.xlu0 %178
    %180 = vrot.lane.b32.xlu0 %v151, 64
    %v181 = vpop.permute.xlu0 %180
    %182 = vrot.lane.b32.xlu0 %v156, 64
    %v183 = vpop.permute.xlu0 %182
    %184 = vrot.lane.b32.xlu0 %v159, 64
    %v185 = vpop.permute.xlu0 %184
    %v194 = vld [vmem:[#allocation4 + $0x10] sm:$0xf]
    %v195 = vld [vmem:[#allocation4 + $0x14] sm:$0xf]
    %v196 = vld [vmem:[#allocation4 + $0x18] sm:$0xf]
    %v197 = vld [vmem:[#allocation4 + $0x1c] sm:$0xf]
    %v198 = vpack.c.bf16 %v135, %v132
    %v199 = vpack.c.bf16 %v143, %v140
    %v200 = vpack.c.bf16 %v151, %v148
    %v201 = vpack.c.bf16 %v159, %v156
    %v202 = vpack.c.bf16 %v173, %v171
    %v203 = vpack.c.bf16 %v177, %v175
    %v204 = vpack.c.bf16 %v181, %v179
    %v205 = vpack.c.bf16 %v185, %v183
    %v210 = vunpack.c.l.b16 %v194
    %v211 = vunpack.c.l.b16 %v195
    %v212 = vunpack.c.l.b16 %v196
    %v213 = vunpack.c.l.b16 %v197
    %v214 = vpack.c.b16 %v211, %v210
    %v215 = vpack.c.b16 %v213, %v212
    %218 = vmatprep.subr.bf16.mxu0 0
    %219 = vmatpush1.bf16.msra.mxu0 %v198
    %220 = vmatprep.subr.bf16.mxu0 0
    %221 = vmatpush1.bf16.msra.mxu0 %v199
    %222 = vmatprep.subr.bf16.mxu0 0
    %223 = vmatpush1.bf16.msra.mxu0 %v200
    %224 = vmatprep.subr.bf16.mxu0 0
    %225 = vmatpush1.bf16.msra.mxu0 %v201
    %226 = vmatprep.subr.bf16.mxu0 0
    %227 = vmatpush1.bf16.msra.mxu0 %v202
    %228 = vmatprep.subr.bf16.mxu0 0
    %229 = vmatpush1.bf16.msra.mxu0 %v203
    %230 = vmatprep.subr.bf16.mxu0 0
    %231 = vmatpush1.bf16.msra.mxu0 %v204
    %232 = vmatprep.subr.bf16.mxu0 0
    %233 = vmatpush1.bf16.msra.mxu0 %v205
    %234 = vmatprep.subr.bf16.mxu0 0
    %235 = vmatpush1.bf16.msra.mxu0 0
    %236 = vmatprep.subr.bf16.mxu0 0
    %237 = vmatpush1.bf16.msra.mxu0 0
    %238 = vmatprep.subr.bf16.mxu0 0
    %239 = vmatpush1.bf16.msra.mxu0 0
    %240 = vmatprep.subr.bf16.mxu0 0
    %241 = vmatpush1.bf16.msra.mxu0 0
    %242 = vmatprep.subr.bf16.mxu0 0
    %243 = vmatpush1.bf16.msra.mxu0 0
    %244 = vmatprep.subr.bf16.mxu0 0
    %245 = vmatpush1.bf16.msra.mxu0 0
    %246 = vmatprep.subr.bf16.mxu0 0
    %247 = vmatpush1.bf16.msra.mxu0 0
    %248 = vmatprep.subr.bf16.mxu0 0
    %249 = vmatpush1.bf16.msra.mxu0 0
    %250 = vmatprep.mubr.bf16.mxu0 0
    %251 = vmatmul.mubr.bf16.gmra.mrb[0].mxu0 %v214
    %v252 = vpop.f32.mrb[0].mxu0
    %v253 = vadd.f32 0.0, %v252
    %v254 = vpop.f32.mrb[0].mxu0
    %v255 = vpop.f32.mrb[0].mxu0
    %v256 = vadd.f32 0.0, %v255
    %v257 = vpop.f32.mrb[0].mxu0
    %258 = vmatprep.mubr.bf16.mxu0 0
    %259 = vmatmul.mubr.bf16.gmra.mrb[0].mxu0 %v215
    %v260 = vpop.f32.mrb[0].mxu0
    %v261 = vadd.f32 0.0, %v260
    %v262 = vpop.f32.mrb[0].mxu0
    %v263 = vpop.f32.mrb[0].mxu0
    %v264 = vadd.f32 0.0, %v263
    %v265 = vpop.f32.mrb[0].mxu0
    %266 = vdwg.mxu0
    %vm267 = vcmask 523264
    %v268 = vsel %vm267, %v253, 0.0
    %v269 = vsel %vm267, %v256, 0.0
    %v270 = vadd.f32 %v268, %v269
    %v271 = vsel %vm267, %v261, 0.0
    %v272 = vadd.f32 %v270, %v271
    %v273 = vsel %vm267, %v264, 0.0
    %v274 = vadd.f32 %v272, %v273
    %v275 = vrot.slane %v274, 4
    %v276 = vadd.f32 %v274, %v275
    %v277 = vrot.slane %v276, 2
    %v278 = vadd.f32 %v276, %v277
    %v279 = vrot.slane %v278, 1
    %v280 = vadd.f32 %v278, %v279
    %v281 = vmul.f32 %v253, %v253
    %v282 = vmul.f32 %v256, %v256
    %v283 = vmul.f32 %v261, %v261
    %v284 = vmul.f32 %v264, %v264
    %v285 = vsel %vm267, %v281, 0.0
    %v286 = vsel %vm267, %v282, 0.0
    %v287 = vadd.f32 %v285, %v286
    %v288 = vsel %vm267, %v283, 0.0
    %v289 = vadd.f32 %v287, %v288
    %v290 = vsel %vm267, %v284, 0.0
    %v291 = vadd.f32 %v289, %v290
    %v292 = vrot.slane %v291, 4
    %v293 = vadd.f32 %v291, %v292
    %v294 = vrot.slane %v293, 2
    %v295 = vadd.f32 %v293, %v294
    %v296 = vrot.slane %v295, 1
    %v297 = vadd.f32 %v295, %v296
    %vm298 = vcmask 1040384
    %v299 = vsel %vm298, %v280, %v297
    %v300 = vld [vmem:[#allocation6] sm:$0xff]
    %v301 = vld [vmem:[#allocation6 + $0x8] sm:$0xff]
    %v302 = vld [vmem:[#allocation6 + $0x10] sm:$0xff]
    %v303 = vld [vmem:[#allocation6 + $0x18] sm:$0xff]
    %v304 = vld [vmem:[#allocation6 + $0x20] sm:$0xff]
    %v305 = vld [vmem:[#allocation6 + $0x28] sm:$0xff]
    %v306 = vld [vmem:[#allocation6 + $0x30] sm:$0xff]
    %v307 = vld [vmem:[#allocation6 + $0x38] sm:$0xff]
    %v309 = vsel %vm267, %v299, 0
    %311 = vmatprep.subr.mxu0 0.0
    %312 = vmatpush1.msra.mxu0 %v300
    %313 = vmatprep.subr.mxu0 0.0
    %314 = vmatpush1.msra.mxu0 %v301
    %315 = vmatprep.subr.mxu0 0.0
    %316 = vmatpush1.msra.mxu0 %v302
    %317 = vmatprep.subr.mxu0 0.0
    %318 = vmatpush1.msra.mxu0 %v303
    %319 = vmatprep.subr.mxu0 0.0
    %320 = vmatpush1.msra.mxu0 %v304
    %321 = vmatprep.subr.mxu0 0.0
    %322 = vmatpush1.msra.mxu0 %v305
    %323 = vmatprep.subr.mxu0 0.0
    %324 = vmatpush1.msra.mxu0 %v306
    %325 = vmatprep.subr.mxu0 0.0
    %326 = vmatpush1.msra.mxu0 %v307
    %327 = vmatprep.subr.mxu0 0.0
    %328 = vmatpush1.msra.mxu0 0.0
    %329 = vmatprep.subr.mxu0 0.0
    %330 = vmatpush1.msra.mxu0 0.0
    %331 = vmatprep.subr.mxu0 0.0
    %332 = vmatpush1.msra.mxu0 0.0
    %333 = vmatprep.subr.mxu0 0.0
    %334 = vmatpush1.msra.mxu0 0.0
    %335 = vmatprep.subr.mxu0 0.0
    %336 = vmatpush1.msra.mxu0 0.0
    %337 = vmatprep.subr.mxu0 0.0
    %338 = vmatpush1.msra.mxu0 0.0
    %339 = vmatprep.subr.mxu0 0.0
    %340 = vmatpush1.msra.mxu0 0.0
    %341 = vmatprep.subr.mxu0 0.0
    %342 = vmatpush1.msra.mxu0 0.0
    %343 = vmatprep.subr.mxu0 0.0
    %344 = vmatpush1.msra.mxu0 0.0
    %345 = vmatprep.subr.mxu0 0.0
    %346 = vmatpush1.msra.mxu0 0.0
    %347 = vmatprep.subr.mxu0 0.0
    %348 = vmatpush1.msra.mxu0 0.0
    %349 = vmatprep.subr.mxu0 0.0
    %350 = vmatpush1.msra.mxu0 0.0
    %351 = vmatprep.subr.mxu0 0.0
    %352 = vmatpush1.msra.mxu0 0.0
    %353 = vmatprep.subr.mxu0 0.0
    %354 = vmatpush1.msra.mxu0 0.0
    %355 = vmatprep.subr.mxu0 0.0
    %356 = vmatpush1.msra.mxu0 0.0
    %357 = vmatprep.subr.mxu0 0.0
    %358 = vmatpush1.msra.mxu0 0.0
    %359 = vmatprep.subr.mxu0 0.0
    %360 = vmatpush1.msra.mxu0 0.0
    %361 = vmatprep.subr.mxu0 0.0
    %362 = vmatpush1.msra.mxu0 0.0
    %363 = vmatprep.subr.mxu0 0.0
    %364 = vmatpush1.msra.mxu0 0.0
    %365 = vmatprep.subr.mxu0 0.0
    %366 = vmatpush1.msra.mxu0 0.0
    %367 = vmatprep.subr.mxu0 0.0
    %368 = vmatpush1.msra.mxu0 0.0
    %369 = vmatprep.subr.mxu0 0.0
    %370 = vmatpush1.msra.mxu0 0.0
    %371 = vmatprep.subr.mxu0 0.0
    %372 = vmatpush1.msra.mxu0 0.0
    %373 = vmatprep.subr.mxu0 0.0
    %374 = vmatpush1.msra.mxu0 0.0
    %375 = vmatprep.mubr.f32.mxu0 0.0
    %376 = vmatmul.mubr.f32.gmra.mrb[0].mxu0 %v309
    %v377 = vpop.f32.mrb[0].mxu0
    %v378 = vadd.f32 0.0, %v377
    %v379 = vpop.f32.mrb[0].mxu0
    %380 = vdwg.mxu0
    %v381 = vmul.f32 %v378, %v378
    %v383 = vrot.slane %v381, 7
    %v385 = vsub.f32 %v378, %v383
    %v386 = vmax.f32 %v385, 0.0
    %v387 = vadd.f32 %v386, 1e-05
    %v388 = vrsqrt.pop %v387
    %v389 = vld [vmem:[#allocation6 + $0x40] sm:$0x1]
    %v390 = vld [vmem:[#allocation6 + $0x41] sm:$0x1]
    %v391 = vlaneseq
    %v392 = vshrl.u32 %v391, 7
    %v393 = vsub.s32 0, %v392
    %v394 = vrot.slane %v378, %v393
    %v395 = vsub.f32 %v253, %v394
    %v396 = vsub.f32 %v256, %v394
    %v397 = vsub.f32 %v261, %v394
    %v398 = vsub.f32 %v264, %v394
    %v400 = vrot.slane %v389, 7
    %v402 = vmul.f32 %v388, %v400
    %v403 = vlaneseq
    %v404 = vshrl.u32 %v403, 7
    %v405 = vsub.s32 1, %v404
    %v406 = vrot.slane %v402, %v405
    %v407 = vmul.f32 %v395, %v406
    %v408 = vmul.f32 %v396, %v406
    %v409 = vmul.f32 %v397, %v406
    %v410 = vmul.f32 %v398, %v406
    %v411 = vlaneseq
    %v412 = vshrl.u32 %v411, 7
    %v413 = vsub.s32 0, %v412
    %v414 = vrot.slane %v390, %v413
    %v415 = vadd.f32 %v407, %v414
    %v416 = vadd.f32 %v408, %v414
    %v417 = vadd.f32 %v409, %v414
    %v418 = vadd.f32 %v410, %v414
    %v419 = vmax.f32 %v415, 0.0
    %v420 = vmax.f32 %v416, 0.0
    %v421 = vmax.f32 %v417, 0.0
    %v422 = vmax.f32 %v418, 0.0
    %v423 = vld [vmem:[#allocation4 + $0x20] sm:$0xf]
    %v424 = vld [vmem:[#allocation4 + $0x24] sm:$0xf]
    %v425 = vld [vmem:[#allocation4 + $0x28] sm:$0xf]
    %v426 = vld [vmem:[#allocation4 + $0x2c] sm:$0xf]
    %v427 = vld [vmem:[#allocation4 + $0x30] sm:$0xf]
    %v428 = vld [vmem:[#allocation4 + $0x34] sm:$0xf]
    %v429 = vld [vmem:[#allocation4 + $0x38] sm:$0xf]
    %v430 = vld [vmem:[#allocation4 + $0x3c] sm:$0xf]
    %v431 = vpack.c.bf16 %v420, %v419
    %v432 = vpack.c.bf16 %v422, %v421
    %v441 = vunpack.c.l.b16 %v423
    %v442 = vunpack.c.l.b16 %v424
    %v443 = vunpack.c.l.b16 %v425
    %v444 = vunpack.c.l.b16 %v426
    %v445 = vunpack.c.l.b16 %v427
    %v446 = vunpack.c.l.b16 %v428
    %v447 = vunpack.c.l.b16 %v429
    %v448 = vunpack.c.l.b16 %v430
    %v449 = vpack.c.b16 %v442, %v441
    %v450 = vpack.c.b16 %v444, %v443
    %v451 = vpack.c.b16 %v446, %v445
    %v452 = vpack.c.b16 %v448, %v447
    %v458 = vsel %vm267, %v431, 0
    %v461 = vsel %vm267, %v432, 0
    %463 = vmatprep.subr.bf16.mxu0 0
    %464 = vmatpush1.bf16.msra.mxu0 %v449
    %465 = vmatprep.subr.bf16.mxu0 0
    %466 = vmatpush1.bf16.msra.mxu0 %v450
    %467 = vmatprep.subr.bf16.mxu0 0
    %468 = vmatpush1.bf16.msra.mxu0 %v451
    %469 = vmatprep.subr.bf16.mxu0 0
    %470 = vmatpush1.bf16.msra.mxu0 %v452
    %471 = vmatprep.subr.bf16.mxu0 0
    %472 = vmatpush1.bf16.msra.mxu0 0
    %473 = vmatprep.subr.bf16.mxu0 0
    %474 = vmatpush1.bf16.msra.mxu0 0
    %475 = vmatprep.subr.bf16.mxu0 0
    %476 = vmatpush1.bf16.msra.mxu0 0
    %477 = vmatprep.subr.bf16.mxu0 0
    %478 = vmatpush1.bf16.msra.mxu0 0
    %479 = vmatprep.subr.bf16.mxu0 0
    %480 = vmatpush1.bf16.msra.mxu0 0
    %481 = vmatprep.subr.bf16.mxu0 0
    %482 = vmatpush1.bf16.msra.mxu0 0
    %483 = vmatprep.subr.bf16.mxu0 0
    %484 = vmatpush1.bf16.msra.mxu0 0
    %485 = vmatprep.subr.bf16.mxu0 0
    %486 = vmatpush1.bf16.msra.mxu0 0
    %487 = vmatprep.subr.bf16.mxu0 0
    %488 = vmatpush1.bf16.msra.mxu0 0
    %489 = vmatprep.subr.bf16.mxu0 0
    %490 = vmatpush1.bf16.msra.mxu0 0
    %491 = vmatprep.subr.bf16.mxu0 0
    %492 = vmatpush1.bf16.msra.mxu0 0
    %493 = vmatprep.subr.bf16.mxu0 0
    %494 = vmatpush1.bf16.msra.mxu0 0
    %495 = vmatprep.mubr.bf16.mxu0 0
    %496 = vmatmul.mubr.bf16.gmra.mrb[0].mxu0 %v458
    %v497 = vpop.f32.mrb[0].mxu0
    %v498 = vadd.f32 0.0, %v497
    %v499 = vpop.f32.mrb[0].mxu0
    %v500 = vpop.f32.mrb[0].mxu0
    %v501 = vadd.f32 0.0, %v500
    %v502 = vpop.f32.mrb[0].mxu0
    %503 = vmatprep.mubr.bf16.mxu0 0
    %504 = vmatmul.mubr.bf16.gmra.mrb[0].mxu0 %v461
    %v505 = vpop.f32.mrb[0].mxu0
    %v506 = vadd.f32 0.0, %v505
    %v507 = vpop.f32.mrb[0].mxu0
    %v508 = vpop.f32.mrb[0].mxu0
    %v509 = vadd.f32 0.0, %v508
    %v510 = vpop.f32.mrb[0].mxu0
    %511 = vdwg.mxu0
    %vm514 = vcmask 1046528
    %v515 = vrot.slane %v498, 1
    %v516 = vrot.slane %v501, 1
    %v517 = vsel %vm514, %v515, %v516
    %518 = vrot.lane.b32.xlu0 %v517, 68
    %v519 = vpop.permute.xlu0 %518
    %520 = vrot.lane.b32.xlu0 %v516, 68
    %v521 = vpop.permute.xlu0 %520
    %v524 = vadd.f32 %v498, %v519
    %v525 = vadd.f32 %v501, %v521
    %v528 = vrot.slane %v506, 1
    %v529 = vrot.slane %v509, 1
    %v530 = vsel %vm514, %v528, %v529
    %531 = vrot.lane.b32.xlu0 %v530, 68
    %v532 = vpop.permute.xlu0 %531
    %533 = vrot.lane.b32.xlu0 %v529, 68
    %v534 = vpop.permute.xlu0 %533
    %v537 = vadd.f32 %v506, %v532
    %v538 = vadd.f32 %v509, %v534
    %v541 = vrot.slane %v537, 1
    %v542 = vrot.slane %v538, 1
    %v543 = vsel %vm514, %v541, %v542
    %v547 = vsel %vm514, %v525, %v541
    %vm548 = vcmask 490496
    %v549 = vsel %vm548, %v524, 0.0
    %v550 = vsel %vm548, %v547, 0.0
    %v551 = vadd.f32 %v549, %v550
    %v552 = vsel %vm548, %v543, 0.0
    %v553 = vadd.f32 %v551, %v552
    %vm554 = vcmask 488448
    %v555 = vsel %vm554, %v542, 0.0
    %v556 = vadd.f32 %v553, %v555
    %v557 = vrot.slane %v556, 4
    %v558 = vadd.f32 %v556, %v557
    %v559 = vrot.slane %v558, 2
    %v560 = vadd.f32 %v558, %v559
    %v561 = vrot.slane %v560, 1
    %v562 = vadd.f32 %v560, %v561
    %v563 = vmul.f32 %v524, %v524
    %v564 = vmul.f32 %v547, %v547
    %v565 = vmul.f32 %v543, %v543
    %v566 = vmul.f32 %v542, %v542
    %v567 = vsel %vm548, %v563, 0.0
    %v568 = vsel %vm548, %v564, 0.0
    %v569 = vadd.f32 %v567, %v568
    %v570 = vsel %vm548, %v565, 0.0
    %v571 = vadd.f32 %v569, %v570
    %v572 = vsel %vm554, %v566, 0.0
    %v573 = vadd.f32 %v571, %v572
    %v574 = vrot.slane %v573, 4
    %v575 = vadd.f32 %v573, %v574
    %v576 = vrot.slane %v575, 2
    %v577 = vadd.f32 %v575, %v576
    %v578 = vrot.slane %v577, 1
    %v579 = vadd.f32 %v577, %v578
    %v580 = vsel %vm298, %v562, %v579
    %v581 = vld [vmem:[#allocation6 + $0x48] sm:$0xff]
    %v582 = vld [vmem:[#allocation6 + $0x50] sm:$0xff]
    %v583 = vld [vmem:[#allocation6 + $0x58] sm:$0xff]
    %v584 = vld [vmem:[#allocation6 + $0x60] sm:$0xff]
    %v585 = vld [vmem:[#allocation6 + $0x68] sm:$0xff]
    %v586 = vld [vmem:[#allocation6 + $0x70] sm:$0xff]
    %v587 = vld [vmem:[#allocation6 + $0x78] sm:$0xff]
    %v588 = vld [vmem:[#allocation6 + $0x80] sm:$0xf]
    %v590 = vsel %vm548, %v580, 0
    %vm592 = vcmask 1043456
    %v594 = vsel %vm592, %v588, 0
    %596 = vmatprep.subr.mxu0 0.0
    %597 = vmatpush1.msra.mxu0 %v581
    %598 = vmatprep.subr.mxu0 0.0
    %599 = vmatpush1.msra.mxu0 %v582
    %600 = vmatprep.subr.mxu0 0.0
    %601 = vmatpush1.msra.mxu0 %v583
    %602 = vmatprep.subr.mxu0 0.0
    %603 = vmatpush1.msra.mxu0 %v584
    %604 = vmatprep.subr.mxu0 0.0
    %605 = vmatpush1.msra.mxu0 %v585
    %606 = vmatprep.subr.mxu0 0.0
    %607 = vmatpush1.msra.mxu0 %v586
    %608 = vmatprep.subr.mxu0 0.0
    %609 = vmatpush1.msra.mxu0 %v587
    %610 = vmatprep.subr.mxu0 0.0
    %611 = vmatpush1.msra.mxu0 %v594
    %612 = vmatprep.subr.mxu0 0.0
    %613 = vmatpush1.msra.mxu0 0.0
    %614 = vmatprep.subr.mxu0 0.0
    %615 = vmatpush1.msra.mxu0 0.0
    %616 = vmatprep.subr.mxu0 0.0
    %617 = vmatpush1.msra.mxu0 0.0
    %618 = vmatprep.subr.mxu0 0.0
    %619 = vmatpush1.msra.mxu0 0.0
    %620 = vmatprep.subr.mxu0 0.0
    %621 = vmatpush1.msra.mxu0 0.0
    %622 = vmatprep.subr.mxu0 0.0
    %623 = vmatpush1.msra.mxu0 0.0
    %624 = vmatprep.subr.mxu0 0.0
    %625 = vmatpush1.msra.mxu0 0.0
    %626 = vmatprep.subr.mxu0 0.0
    %627 = vmatpush1.msra.mxu0 0.0
    %628 = vmatprep.subr.mxu0 0.0
    %629 = vmatpush1.msra.mxu0 0.0
    %630 = vmatprep.subr.mxu0 0.0
    %631 = vmatpush1.msra.mxu0 0.0
    %632 = vmatprep.subr.mxu0 0.0
    %633 = vmatpush1.msra.mxu0 0.0
    %634 = vmatprep.subr.mxu0 0.0
    %635 = vmatpush1.msra.mxu0 0.0
    %636 = vmatprep.subr.mxu0 0.0
    %637 = vmatpush1.msra.mxu0 0.0
    %638 = vmatprep.subr.mxu0 0.0
    %639 = vmatpush1.msra.mxu0 0.0
    %640 = vmatprep.subr.mxu0 0.0
    %641 = vmatpush1.msra.mxu0 0.0
    %642 = vmatprep.subr.mxu0 0.0
    %643 = vmatpush1.msra.mxu0 0.0
    %644 = vmatprep.subr.mxu0 0.0
    %645 = vmatpush1.msra.mxu0 0.0
    %646 = vmatprep.subr.mxu0 0.0
    %647 = vmatpush1.msra.mxu0 0.0
    %648 = vmatprep.subr.mxu0 0.0
    %649 = vmatpush1.msra.mxu0 0.0
    %650 = vmatprep.subr.mxu0 0.0
    %651 = vmatpush1.msra.mxu0 0.0
    %652 = vmatprep.subr.mxu0 0.0
    %653 = vmatpush1.msra.mxu0 0.0
    %654 = vmatprep.subr.mxu0 0.0
    %655 = vmatpush1.msra.mxu0 0.0
    %656 = vmatprep.subr.mxu0 0.0
    %657 = vmatpush1.msra.mxu0 0.0
    %658 = vmatprep.subr.mxu0 0.0
    %659 = vmatpush1.msra.mxu0 0.0
    %660 = vmatprep.mubr.f32.mxu0 0.0
    %661 = vmatmul.mubr.f32.gmra.mrb[0].mxu0 %v590
    %v662 = vpop.f32.mrb[0].mxu0
    %v663 = vadd.f32 0.0, %v662
    %v664 = vpop.f32.mrb[0].mxu0
    %665 = vdwg.mxu0
    %v666 = vmul.f32 %v663, %v663
    %v668 = vrot.slane %v666, 7
    %v670 = vsub.f32 %v663, %v668
    %v671 = vmax.f32 %v670, 0.0
    %v672 = vadd.f32 %v671, 1e-05
    %v673 = vrsqrt.pop %v672
    %v674 = vld [vmem:[#allocation6 + $0x88] sm:$0x1]
    %v675 = vld [vmem:[#allocation6 + $0x89] sm:$0x1]
    %v676 = vlaneseq
    %v677 = vshrl.u32 %v676, 7
    %v678 = vsub.s32 0, %v677
    %v679 = vrot.slane %v663, %v678
    %v680 = vsub.f32 %v524, %v679
    %v681 = vsub.f32 %v547, %v679
    %v682 = vsub.f32 %v543, %v679
    %v683 = vsub.f32 %v542, %v679
    %v685 = vrot.slane %v674, 7
    %v687 = vmul.f32 %v673, %v685
    %v688 = vlaneseq
    %v689 = vshrl.u32 %v688, 7
    %v690 = vsub.s32 1, %v689
    %v691 = vrot.slane %v687, %v690
    %v692 = vmul.f32 %v680, %v691
    %v693 = vmul.f32 %v681, %v691
    %v694 = vmul.f32 %v682, %v691
    %v695 = vmul.f32 %v683, %v691
    %v696 = vlaneseq
    %v697 = vshrl.u32 %v696, 7
    %v698 = vsub.s32 0, %v697
    %v699 = vrot.slane %v675, %v698
    %v700 = vadd.f32 %v692, %v699
    %v701 = vadd.f32 %v693, %v699
    %v702 = vadd.f32 %v694, %v699
    %v703 = vadd.f32 %v695, %v699
    %v704 = vmax.f32 %v700, 0.0
    %v705 = vmax.f32 %v701, 0.0
    %v706 = vmax.f32 %v702, 0.0
    %v707 = vmax.f32 %v703, 0.0
    %v708 = vld [vmem:[#allocation4 + $0x40] sm:$0xf]
    %v709 = vld [vmem:[#allocation4 + $0x44] sm:$0xf]
    %v710 = vld [vmem:[#allocation4 + $0x48] sm:$0xf]
    %v711 = vld [vmem:[#allocation4 + $0x4c] sm:$0xf]
    %v712 = vld [vmem:[#allocation4 + $0x50] sm:$0xf]
    %v713 = vld [vmem:[#allocation4 + $0x54] sm:$0xf]
    %v714 = vld [vmem:[#allocation4 + $0x58] sm:$0xf]
    %v715 = vld [vmem:[#allocation4 + $0x5c] sm:$0x3]
    %v716 = vpack.c.bf16 %v705, %v704
    %v717 = vpack.c.bf16 %v707, %v706
    %v726 = vunpack.c.l.b16 %v708
    %v727 = vunpack.c.l.b16 %v709
    %v728 = vunpack.c.l.b16 %v710
    %v729 = vunpack.c.l.b16 %v711
    %v730 = vunpack.c.l.b16 %v712
    %v731 = vunpack.c.l.b16 %v713
    %v732 = vunpack.c.l.b16 %v714
    %v733 = vunpack.c.l.b16 %v715
    %v734 = vpack.c.b16 %v727, %v726
    %v735 = vpack.c.b16 %v729, %v728
    %v736 = vpack.c.b16 %v731, %v730
    %v737 = vpack.c.b16 %v733, %v732
    %v742 = vsel %vm548, %v716, 0
    %v745 = vsel %vm548, %v717, 0
    %vm747 = vcmask 1045504
    %v749 = vsel %vm747, %v737, 0
    %751 = vmatprep.subr.bf16.mxu0 0
    %752 = vmatpush1.bf16.msra.mxu0 %v734
    %753 = vmatprep.subr.bf16.mxu0 0
    %754 = vmatpush1.bf16.msra.mxu0 %v735
    %755 = vmatprep.subr.bf16.mxu0 0
    %756 = vmatpush1.bf16.msra.mxu0 %v736
    %757 = vmatprep.subr.bf16.mxu0 0
    %758 = vmatpush1.bf16.msra.mxu0 %v749
    %759 = vmatprep.subr.bf16.mxu0 0
    %760 = vmatpush1.bf16.msra.mxu0 0
    %761 = vmatprep.subr.bf16.mxu0 0
    %762 = vmatpush1.bf16.msra.mxu0 0
    %763 = vmatprep.subr.bf16.mxu0 0
    %764 = vmatpush1.bf16.msra.mxu0 0
    %765 = vmatprep.subr.bf16.mxu0 0
    %766 = vmatpush1.bf16.msra.mxu0 0
    %767 = vmatprep.subr.bf16.mxu0 0
    %768 = vmatpush1.bf16.msra.mxu0 0
    %769 = vmatprep.subr.bf16.mxu0 0
    %770 = vmatpush1.bf16.msra.mxu0 0
    %771 = vmatprep.subr.bf16.mxu0 0
    %772 = vmatpush1.bf16.msra.mxu0 0
    %773 = vmatprep.subr.bf16.mxu0 0
    %774 = vmatpush1.bf16.msra.mxu0 0
    %775 = vmatprep.subr.bf16.mxu0 0
    %776 = vmatpush1.bf16.msra.mxu0 0
    %777 = vmatprep.subr.bf16.mxu0 0
    %778 = vmatpush1.bf16.msra.mxu0 0
    %779 = vmatprep.subr.bf16.mxu0 0
    %780 = vmatpush1.bf16.msra.mxu0 0
    %781 = vmatprep.subr.bf16.mxu0 0
    %782 = vmatpush1.bf16.msra.mxu0 0
    %783 = vmatprep.mubr.bf16.mxu0 0
    %784 = vmatmul.mubr.bf16.gmra.mrb[0].mxu0 %v742
    %v785 = vpop.f32.mrb[0].mxu0
    %v786 = vadd.f32 0.0, %v785
    %v787 = vpop.f32.mrb[0].mxu0
    %v788 = vpop.f32.mrb[0].mxu0
    %v789 = vadd.f32 0.0, %v788
    %v790 = vpop.f32.mrb[0].mxu0
    %791 = vmatprep.mubr.bf16.mxu0 0
    %792 = vmatmul.mubr.bf16.gmra.mrb[0].mxu0 %v745
    %v793 = vpop.f32.mrb[0].mxu0
    %v794 = vadd.f32 0.0, %v793
    %v795 = vpop.f32.mrb[0].mxu0
    %v796 = vpop.f32.mrb[0].mxu0
    %v797 = vadd.f32 0.0, %v796
    %v798 = vpop.f32.mrb[0].mxu0
    %799 = vdwg.mxu0
    %v804 = vrot.slane %v786, 2
    %v805 = vrot.slane %v789, 2
    %v806 = vsel %vm747, %v804, %v805
    %v807 = vrot.slane %v794, 2
    %v808 = vsel %vm747, %v805, %v807
    %v809 = vrot.slane %v797, 2
    %v810 = vsel %vm747, %v807, %v809
    %811 = vrot.lane.b32.xlu0 %v804, 72
    %v812 = vpop.permute.xlu0 %811
    %813 = vrot.lane.b32.xlu0 %v806, 72
    %v814 = vpop.permute.xlu0 %813
    %815 = vrot.lane.b32.xlu0 %v808, 72
    %v816 = vpop.permute.xlu0 %815
    %817 = vrot.lane.b32.xlu0 %v810, 72
    %v818 = vpop.permute.xlu0 %817
    %819 = vrot.lane.b32.xlu0 %v809, 72
    %v820 = vpop.permute.xlu0 %819
    %v826 = vsel %vm747, %v797, %v812
    %v827 = vld [vmem:[#allocation4 + $0x60] sm:$0xf]
    %v828 = vld [vmem:[#allocation4 + $0x64] sm:$0x7]
    %v829 = vpack.c.bf16 %v789, %v786
    %v830 = vpack.c.bf16 %v826, %v794
    %v831 = vpack.c.bf16 %v816, %v814
    %v832 = vpack.c.bf16 %v820, %v818
    %v835 = vunpack.c.l.b16 %v827
    %v836 = vunpack.c.l.b16 %v828
    %v837 = vpack.c.b16 %v836, %v835
    %v839 = vsel %vm548, %v837, 0
    %v842 = vsel %vm747, %v832, 0
    %844 = vmatprep.subr.bf16.mxu0 0
    %845 = vmatpush1.bf16.msra.mxu0 %v829
    %846 = vmatprep.subr.bf16.mxu0 0
    %847 = vmatpush1.bf16.msra.mxu0 %v830
    %848 = vmatprep.subr.bf16.mxu0 0
    %849 = vmatpush1.bf16.msra.mxu0 %v831
    %850 = vmatprep.subr.bf16.mxu0 0
    %851 = vmatpush1.bf16.msra.mxu0 %v842
    %852 = vmatprep.subr.bf16.mxu0 0
    %853 = vmatpush1.bf16.msra.mxu0 0
    %854 = vmatprep.subr.bf16.mxu0 0
    %855 = vmatpush1.bf16.msra.mxu0 0
    %856 = vmatprep.subr.bf16.mxu0 0
    %857 = vmatpush1.bf16.msra.mxu0 0
    %858 = vmatprep.subr.bf16.mxu0 0
    %859 = vmatpush1.bf16.msra.mxu0 0
    %860 = vmatprep.subr.bf16.mxu0 0
    %861 = vmatpush1.bf16.msra.mxu0 0
    %862 = vmatprep.subr.bf16.mxu0 0
    %863 = vmatpush1.bf16.msra.mxu0 0
    %864 = vmatprep.subr.bf16.mxu0 0
    %865 = vmatpush1.bf16.msra.mxu0 0
    %866 = vmatprep.subr.bf16.mxu0 0
    %867 = vmatpush1.bf16.msra.mxu0 0
    %868 = vmatprep.subr.bf16.mxu0 0
    %869 = vmatpush1.bf16.msra.mxu0 0
    %870 = vmatprep.subr.bf16.mxu0 0
    %871 = vmatpush1.bf16.msra.mxu0 0
    %872 = vmatprep.subr.bf16.mxu0 0
    %873 = vmatpush1.bf16.msra.mxu0 0
    %874 = vmatprep.subr.bf16.mxu0 0
    %875 = vmatpush1.bf16.msra.mxu0 0
    %876 = vmatprep.mubr.bf16.mxu0 0
    %877 = vmatmul.mubr.bf16.gmra.mrb[0].mxu0 %v839
    %v878 = vpop.f32.mrb[0].mxu0
    %v879 = vadd.f32 0.0, %v878
    %v880 = vpop.f32.mrb[0].mxu0
    %v881 = vpop.f32.mrb[0].mxu0
    %v882 = vadd.f32 0.0, %v881
    %v883 = vpop.f32.mrb[0].mxu0
    %884 = vdwg.mxu0
    %vm885 = vcmask 457728
    %v886 = vsel %vm885, %v879, 0.0
    %vm887 = vcmask 455680
    %v888 = vsel %vm887, %v882, 0.0
    %v889 = vadd.f32 %v886, %v888
    %v890 = vrot.slane %v889, 4
    %v891 = vadd.f32 %v889, %v890
    %v892 = vrot.slane %v891, 2
    %v893 = vadd.f32 %v891, %v892
    %v894 = vrot.slane %v893, 1
    %v895 = vadd.f32 %v893, %v894
    %v896 = vmul.f32 %v879, %v879
    %v897 = vmul.f32 %v882, %v882
    %v898 = vsel %vm885, %v896, 0.0
    %v899 = vsel %vm887, %v897, 0.0
    %v900 = vadd.f32 %v898, %v899
    %v901 = vrot.slane %v900, 4
    %v902 = vadd.f32 %v900, %v901
    %v903 = vrot.slane %v902, 2
    %v904 = vadd.f32 %v902, %v903
    %v905 = vrot.slane %v904, 1
    %v906 = vadd.f32 %v904, %v905
    %v907 = vsel %vm298, %v895, %v906
    %v908 = vld [vmem:[#allocation6 + $0x90] sm:$0xff]
    %v909 = vld [vmem:[#allocation6 + $0x98] sm:$0xff]
    %v910 = vld [vmem:[#allocation6 + $0xa0] sm:$0xff]
    %v911 = vld [vmem:[#allocation6 + $0xa8] sm:$0xff]
    %v912 = vld [vmem:[#allocation6 + $0xb0] sm:$0xff]
    %v913 = vld [vmem:[#allocation6 + $0xb8] sm:$0xff]
    %v914 = vld [vmem:[#allocation6 + $0xc0] sm:$0xff]
    %v916 = vsel %vm885, %v907, 0
    %918 = vmatprep.subr.mxu0 0.0
    %919 = vmatpush1.msra.mxu0 %v908
    %920 = vmatprep.subr.mxu0 0.0
    %921 = vmatpush1.msra.mxu0 %v909
    %922 = vmatprep.subr.mxu0 0.0
    %923 = vmatpush1.msra.mxu0 %v910
    %924 = vmatprep.subr.mxu0 0.0
    %925 = vmatpush1.msra.mxu0 %v911
    %926 = vmatprep.subr.mxu0 0.0
    %927 = vmatpush1.msra.mxu0 %v912
    %928 = vmatprep.subr.mxu0 0.0
    %929 = vmatpush1.msra.mxu0 %v913
    %930 = vmatprep.subr.mxu0 0.0
    %931 = vmatpush1.msra.mxu0 %v914
    %932 = vmatprep.subr.mxu0 0.0
    %933 = vmatpush1.msra.mxu0 0.0
    %934 = vmatprep.subr.mxu0 0.0
    %935 = vmatpush1.msra.mxu0 0.0
    %936 = vmatprep.subr.mxu0 0.0
    %937 = vmatpush1.msra.mxu0 0.0
    %938 = vmatprep.subr.mxu0 0.0
    %939 = vmatpush1.msra.mxu0 0.0
    %940 = vmatprep.subr.mxu0 0.0
    %941 = vmatpush1.msra.mxu0 0.0
    %942 = vmatprep.subr.mxu0 0.0
    %943 = vmatpush1.msra.mxu0 0.0
    %944 = vmatprep.subr.mxu0 0.0
    %945 = vmatpush1.msra.mxu0 0.0
    %946 = vmatprep.subr.mxu0 0.0
    %947 = vmatpush1.msra.mxu0 0.0
    %948 = vmatprep.subr.mxu0 0.0
    %949 = vmatpush1.msra.mxu0 0.0
    %950 = vmatprep.subr.mxu0 0.0
    %951 = vmatpush1.msra.mxu0 0.0
    %952 = vmatprep.subr.mxu0 0.0
    %953 = vmatpush1.msra.mxu0 0.0
    %954 = vmatprep.subr.mxu0 0.0
    %955 = vmatpush1.msra.mxu0 0.0
    %956 = vmatprep.subr.mxu0 0.0
    %957 = vmatpush1.msra.mxu0 0.0
    %958 = vmatprep.subr.mxu0 0.0
    %959 = vmatpush1.msra.mxu0 0.0
    %960 = vmatprep.subr.mxu0 0.0
    %961 = vmatpush1.msra.mxu0 0.0
    %962 = vmatprep.subr.mxu0 0.0
    %963 = vmatpush1.msra.mxu0 0.0
    %964 = vmatprep.subr.mxu0 0.0
    %965 = vmatpush1.msra.mxu0 0.0
    %966 = vmatprep.subr.mxu0 0.0
    %967 = vmatpush1.msra.mxu0 0.0
    %968 = vmatprep.subr.mxu0 0.0
    %969 = vmatpush1.msra.mxu0 0.0
    %970 = vmatprep.subr.mxu0 0.0
    %971 = vmatpush1.msra.mxu0 0.0
    %972 = vmatprep.subr.mxu0 0.0
    %973 = vmatpush1.msra.mxu0 0.0
    %974 = vmatprep.subr.mxu0 0.0
    %975 = vmatpush1.msra.mxu0 0.0
    %976 = vmatprep.subr.mxu0 0.0
    %977 = vmatpush1.msra.mxu0 0.0
    %978 = vmatprep.subr.mxu0 0.0
    %979 = vmatpush1.msra.mxu0 0.0
    %980 = vmatprep.subr.mxu0 0.0
    %981 = vmatpush1.msra.mxu0 0.0
    %982 = vmatprep.mubr.f32.mxu0 0.0
    %983 = vmatmul.mubr.f32.gmra.mrb[0].mxu0 %v916
    %v984 = vpop.f32.mrb[0].mxu0
    %v985 = vadd.f32 0.0, %v984
    %v986 = vpop.f32.mrb[0].mxu0
    %987 = vdwg.mxu0
    %v988 = vmul.f32 %v985, %v985
    %v990 = vrot.slane %v988, 7
    %v992 = vsub.f32 %v985, %v990
    %v993 = vmax.f32 %v992, 0.0
    %v994 = vadd.f32 %v993, 1e-05
    %v995 = vrsqrt.pop %v994
    %v996 = vld [vmem:[#allocation6 + $0xc8] sm:$0x1]
    %v997 = vld [vmem:[#allocation6 + $0xc9] sm:$0x1]
    %v998 = vlaneseq
    %v999 = vshrl.u32 %v998, 7
    %v1000 = vsub.s32 0, %v999
    %v1001 = vrot.slane %v985, %v1000
    %v1002 = vsub.f32 %v879, %v1001
    %v1003 = vsub.f32 %v882, %v1001
    %v1005 = vrot.slane %v996, 7
    %v1007 = vmul.f32 %v995, %v1005
    %v1008 = vlaneseq
    %v1009 = vshrl.u32 %v1008, 7
    %v1010 = vsub.s32 1, %v1009
    %v1011 = vrot.slane %v1007, %v1010
    %v1012 = vmul.f32 %v1002, %v1011
    %v1013 = vmul.f32 %v1003, %v1011
    %v1014 = vlaneseq
    %v1015 = vshrl.u32 %v1014, 7
    %v1016 = vsub.s32 0, %v1015
    %v1017 = vrot.slane %v997, %v1016
    %v1018 = vadd.f32 %v1012, %v1017
    %v1019 = vadd.f32 %v1013, %v1017
    %v1020 = vmax.f32 %v1018, 0.0
    %v1021 = vmax.f32 %v1019, 0.0
    %v1022 = vld [vmem:[#allocation4 + $0x68] sm:$0xf]
    %v1023 = vld [vmem:[#allocation4 + $0x6c] sm:$0xf]
    %v1024 = vld [vmem:[#allocation4 + $0x70] sm:$0xf]
    %v1025 = vld [vmem:[#allocation4 + $0x74] sm:$0xf]
    %v1026 = vld [vmem:[#allocation4 + $0x78] sm:$0xf]
    %v1027 = vld [vmem:[#allocation4 + $0x7c] sm:$0xf]
    %v1028 = vld [vmem:[#allocation4 + $0x80] sm:$0xf]
    %v1029 = vpack.c.bf16 %v1021, %v1020
    %v1037 = vunpack.c.l.b16 %v1022
    %v1038 = vunpack.c.l.b16 %v1023
    %v1039 = vunpack.c.l.b16 %v1024
    %v1040 = vunpack.c.l.b16 %v1025
    %v1041 = vunpack.c.l.b16 %v1026
    %v1042 = vunpack.c.l.b16 %v1027
    %v1043 = vunpack.c.l.b16 %v1028
    %v1044 = vpack.c.b16 %v1038, %v1037
    %v1045 = vpack.c.b16 %v1040, %v1039
    %v1046 = vpack.c.b16 %v1042, %v1041
    %v1047 = vpack.c.b16 %v1043, %v1043
    %v1052 = vsel %vm885, %v1029, 0
    %v1055 = vsel %vm592, %v1047, 0
    %1057 = vmatprep.subr.bf16.mxu0 0
    %1058 = vmatpush1.bf16.msra.mxu0 %v1044
    %1059 = vmatprep.subr.bf16.mxu0 0
    %1060 = vmatpush1.bf16.msra.mxu0 %v1045
    %1061 = vmatprep.subr.bf16.mxu0 0
    %1062 = vmatpush1.bf16.msra.mxu0 %v1046
    %1063 = vmatprep.subr.bf16.mxu0 0
    %1064 = vmatpush1.bf16.msra.mxu0 %v1055
    %1065 = vmatprep.subr.bf16.mxu0 0
    %1066 = vmatpush1.bf16.msra.mxu0 0
    %1067 = vmatprep.subr.bf16.mxu0 0
    %1068 = vmatpush1.bf16.msra.mxu0 0
    %1069 = vmatprep.subr.bf16.mxu0 0
    %1070 = vmatpush1.bf16.msra.mxu0 0
    %1071 = vmatprep.subr.bf16.mxu0 0
    %1072 = vmatpush1.bf16.msra.mxu0 0
    %1073 = vmatprep.subr.bf16.mxu0 0
    %1074 = vmatpush1.bf16.msra.mxu0 0
    %1075 = vmatprep.subr.bf16.mxu0 0
    %1076 = vmatpush1.bf16.msra.mxu0 0
    %1077 = vmatprep.subr.bf16.mxu0 0
    %1078 = vmatpush1.bf16.msra.mxu0 0
    %1079 = vmatprep.subr.bf16.mxu0 0
    %1080 = vmatpush1.bf16.msra.mxu0 0
    %1081 = vmatprep.subr.bf16.mxu0 0
    %1082 = vmatpush1.bf16.msra.mxu0 0
    %1083 = vmatprep.subr.bf16.mxu0 0
    %1084 = vmatpush1.bf16.msra.mxu0 0
    %1085 = vmatprep.subr.bf16.mxu0 0
    %1086 = vmatpush1.bf16.msra.mxu0 0
    %1087 = vmatprep.subr.bf16.mxu0 0
    %1088 = vmatpush1.bf16.msra.mxu0 0
    %1089 = vmatprep.mubr.bf16.mxu0 0
    %1090 = vmatmul.mubr.bf16.gmra.mrb[0].mxu0 %v1052
    %v1091 = vpop.f32.mrb[0].mxu0
    %v1092 = vadd.f32 0.0, %v1091
    %v1093 = vpop.f32.mrb[0].mxu0
    %v1094 = vpop.f32.mrb[0].mxu0
    %v1095 = vadd.f32 0.0, %v1094
    %v1096 = vpop.f32.mrb[0].mxu0
    %1097 = vdwg.mxu0
    %v1099 = vrot.slane %v1092, 1
    %1100 = vrot.lane.b32.xlu0 %v1099, 80
    %v1101 = vpop.permute.xlu0 %1100
    %v1103 = vadd.f32 %v1092, %v1101
    %v1105 = vrot.slane %v1095, 1
    %1106 = vrot.lane.b32.xlu0 %v1105, 80
    %v1107 = vpop.permute.xlu0 %1106
    %v1109 = vadd.f32 %v1092, %v1107
    %v1110 = vadd.f32 %v1095, %v1107
    %v1113 = vrot.slane %v1109, 1
    %v1114 = vrot.slane %v1110, 1
    %v1115 = vsel %vm514, %v1113, %v1114
    %v1118 = vsel %vm747, %v1103, %v1115
    %vm1119 = vcmask 392192
    %v1120 = vsel %vm1119, %v1118, 0.0
    %vm1121 = vcmask 388096
    %v1122 = vsel %vm1121, %v1114, 0.0
    %v1123 = vadd.f32 %v1120, %v1122
    %v1124 = vrot.slane %v1123, 4
    %v1125 = vadd.f32 %v1123, %v1124
    %v1126 = vrot.slane %v1125, 2
    %v1127 = vadd.f32 %v1125, %v1126
    %v1128 = vrot.slane %v1127, 1
    %v1129 = vadd.f32 %v1127, %v1128
    %v1130 = vmul.f32 %v1118, %v1118
    %v1131 = vmul.f32 %v1114, %v1114
    %v1132 = vsel %vm1119, %v1130, 0.0
    %v1133 = vsel %vm1121, %v1131, 0.0
    %v1134 = vadd.f32 %v1132, %v1133
    %v1135 = vrot.slane %v1134, 4
    %v1136 = vadd.f32 %v1134, %v1135
    %v1137 = vrot.slane %v1136, 2
    %v1138 = vadd.f32 %v1136, %v1137
    %v1139 = vrot.slane %v1138, 1
    %v1140 = vadd.f32 %v1138, %v1139
    %v1141 = vsel %vm298, %v1129, %v1140
    %v1142 = vld [vmem:[#allocation6 + $0xd0] sm:$0xff]
    %v1143 = vld [vmem:[#allocation6 + $0xd8] sm:$0xff]
    %v1144 = vld [vmem:[#allocation6 + $0xe0] sm:$0xff]
    %v1145 = vld [vmem:[#allocation6 + $0xe8] sm:$0xff]
    %v1146 = vld [vmem:[#allocation6 + $0xf0] sm:$0xff]
    %v1147 = vld [vmem:[#allocation6 + $0xf8] sm:$0xff]
    %v1149 = vsel %vm1119, %v1141, 0
    %1151 = vmatprep.subr.mxu0 0.0
    %1152 = vmatpush1.msra.mxu0 %v1142
    %1153 = vmatprep.subr.mxu0 0.0
    %1154 = vmatpush1.msra.mxu0 %v1143
    %1155 = vmatprep.subr.mxu0 0.0
    %1156 = vmatpush1.msra.mxu0 %v1144
    %1157 = vmatprep.subr.mxu0 0.0
    %1158 = vmatpush1.msra.mxu0 %v1145
    %1159 = vmatprep.subr.mxu0 0.0
    %1160 = vmatpush1.msra.mxu0 %v1146
    %1161 = vmatprep.subr.mxu0 0.0
    %1162 = vmatpush1.msra.mxu0 %v1147
    %1163 = vmatprep.subr.mxu0 0.0
    %1164 = vmatpush1.msra.mxu0 0.0
    %1165 = vmatprep.subr.mxu0 0.0
    %1166 = vmatpush1.msra.mxu0 0.0
    %1167 = vmatprep.subr.mxu0 0.0
    %1168 = vmatpush1.msra.mxu0 0.0
    %1169 = vmatprep.subr.mxu0 0.0
    %1170 = vmatpush1.msra.mxu0 0.0
    %1171 = vmatprep.subr.mxu0 0.0
    %1172 = vmatpush1.msra.mxu0 0.0
    %1173 = vmatprep.subr.mxu0 0.0
    %1174 = vmatpush1.msra.mxu0 0.0
    %1175 = vmatprep.subr.mxu0 0.0
    %1176 = vmatpush1.msra.mxu0 0.0
    %1177 = vmatprep.subr.mxu0 0.0
    %1178 = vmatpush1.msra.mxu0 0.0
    %1179 = vmatprep.subr.mxu0 0.0
    %1180 = vmatpush1.msra.mxu0 0.0
    %1181 = vmatprep.subr.mxu0 0.0
    %1182 = vmatpush1.msra.mxu0 0.0
    %1183 = vmatprep.subr.mxu0 0.0
    %1184 = vmatpush1.msra.mxu0 0.0
    %1185 = vmatprep.subr.mxu0 0.0
    %1186 = vmatpush1.msra.mxu0 0.0
    %1187 = vmatprep.subr.mxu0 0.0
    %1188 = vmatpush1.msra.mxu0 0.0
    %1189 = vmatprep.subr.mxu0 0.0
    %1190 = vmatpush1.msra.mxu0 0.0
    %1191 = vmatprep.subr.mxu0 0.0
    %1192 = vmatpush1.msra.mxu0 0.0
    %1193 = vmatprep.subr.mxu0 0.0
    %1194 = vmatpush1.msra.mxu0 0.0
    %1195 = vmatprep.subr.mxu0 0.0
    %1196 = vmatpush1.msra.mxu0 0.0
    %1197 = vmatprep.subr.mxu0 0.0
    %1198 = vmatpush1.msra.mxu0 0.0
    %1199 = vmatprep.subr.mxu0 0.0
    %1200 = vmatpush1.msra.mxu0 0.0
    %1201 = vmatprep.subr.mxu0 0.0
    %1202 = vmatpush1.msra.mxu0 0.0
    %1203 = vmatprep.subr.mxu0 0.0
    %1204 = vmatpush1.msra.mxu0 0.0
    %1205 = vmatprep.subr.mxu0 0.0
    %1206 = vmatpush1.msra.mxu0 0.0
    %1207 = vmatprep.subr.mxu0 0.0
    %1208 = vmatpush1.msra.mxu0 0.0
    %1209 = vmatprep.subr.mxu0 0.0
    %1210 = vmatpush1.msra.mxu0 0.0
    %1211 = vmatprep.subr.mxu0 0.0
    %1212 = vmatpush1.msra.mxu0 0.0
    %1213 = vmatprep.subr.mxu0 0.0
    %1214 = vmatpush1.msra.mxu0 0.0
    %1215 = vmatprep.mubr.f32.mxu0 0.0
    %1216 = vmatmul.mubr.f32.gmra.mrb[0].mxu0 %v1149
    %v1217 = vpop.f32.mrb[0].mxu0
    %v1218 = vadd.f32 0.0, %v1217
    %v1219 = vpop.f32.mrb[0].mxu0
    %1220 = vdwg.mxu0
    %v1221 = vmul.f32 %v1218, %v1218
    %v1223 = vrot.slane %v1221, 7
    %v1225 = vsub.f32 %v1218, %v1223
    %v1226 = vmax.f32 %v1225, 0.0
    %v1227 = vadd.f32 %v1226, 1e-05
    %v1228 = vrsqrt.pop %v1227
    %v1229 = vld [vmem:[#allocation6 + $0x100] sm:$0x1]
    %v1230 = vld [vmem:[#allocation6 + $0x101] sm:$0x1]
    %v1231 = vlaneseq
    %v1232 = vshrl.u32 %v1231, 7
    %v1233 = vsub.s32 0, %v1232
    %v1234 = vrot.slane %v1218, %v1233
    %v1235 = vsub.f32 %v1118, %v1234
    %v1236 = vsub.f32 %v1114, %v1234
    %v1238 = vrot.slane %v1229, 7
    %v1240 = vmul.f32 %v1228, %v1238
    %v1241 = vlaneseq
    %v1242 = vshrl.u32 %v1241, 7
    %v1243 = vsub.s32 1, %v1242
    %v1244 = vrot.slane %v1240, %v1243
    %v1245 = vmul.f32 %v1235, %v1244
    %v1246 = vmul.f32 %v1236, %v1244
    %v1247 = vlaneseq
    %v1248 = vshrl.u32 %v1247, 7
    %v1249 = vsub.s32 0, %v1248
    %v1250 = vrot.slane %v1230, %v1249
    %v1251 = vadd.f32 %v1245, %v1250
    %v1252 = vadd.f32 %v1246, %v1250
    %v1253 = vmax.f32 %v1251, 0.0
    %v1254 = vmax.f32 %v1252, 0.0
    %v1255 = vld [vmem:[#allocation4 + $0x88] sm:$0xf]
    %v1256 = vld [vmem:[#allocation4 + $0x8c] sm:$0xf]
    %v1257 = vld [vmem:[#allocation4 + $0x90] sm:$0xf]
    %v1258 = vld [vmem:[#allocation4 + $0x94] sm:$0xf]
    %v1259 = vld [vmem:[#allocation4 + $0x98] sm:$0xf]
    %v1260 = vld [vmem:[#allocation4 + $0x9c] sm:$0xf]
    %v1261 = vpack.c.bf16 %v1254, %v1253
    %v1268 = vunpack.c.l.b16 %v1255
    %v1269 = vunpack.c.l.b16 %v1256
    %v1270 = vunpack.c.l.b16 %v1257
    %v1271 = vunpack.c.l.b16 %v1258
    %v1272 = vunpack.c.l.b16 %v1259
    %v1273 = vunpack.c.l.b16 %v1260
    %v1274 = vpack.c.b16 %v1269, %v1268
    %v1275 = vpack.c.b16 %v1271, %v1270
    %v1276 = vpack.c.b16 %v1273, %v1272
    %v1281 = vsel %vm1119, %v1261, 0
    %1283 = vmatprep.subr.bf16.mxu0 0
    %1284 = vmatpush1.bf16.msra.mxu0 %v1274
    %1285 = vmatprep.subr.bf16.mxu0 0
    %1286 = vmatpush1.bf16.msra.mxu0 %v1275
    %1287 = vmatprep.subr.bf16.mxu0 0
    %1288 = vmatpush1.bf16.msra.mxu0 %v1276
    %1289 = vmatprep.subr.bf16.mxu0 0
    %1290 = vmatpush1.bf16.msra.mxu0 0
    %1291 = vmatprep.subr.bf16.mxu0 0
    %1292 = vmatpush1.bf16.msra.mxu0 0
    %1293 = vmatprep.subr.bf16.mxu0 0
    %1294 = vmatpush1.bf16.msra.mxu0 0
    %1295 = vmatprep.subr.bf16.mxu0 0
    %1296 = vmatpush1.bf16.msra.mxu0 0
    %1297 = vmatprep.subr.bf16.mxu0 0
    %1298 = vmatpush1.bf16.msra.mxu0 0
    %1299 = vmatprep.subr.bf16.mxu0 0
    %1300 = vmatpush1.bf16.msra.mxu0 0
    %1301 = vmatprep.subr.bf16.mxu0 0
    %1302 = vmatpush1.bf16.msra.mxu0 0
    %1303 = vmatprep.subr.bf16.mxu0 0
    %1304 = vmatpush1.bf16.msra.mxu0 0
    %1305 = vmatprep.subr.bf16.mxu0 0
    %1306 = vmatpush1.bf16.msra.mxu0 0
    %1307 = vmatprep.subr.bf16.mxu0 0
    %1308 = vmatpush1.bf16.msra.mxu0 0
    %1309 = vmatprep.subr.bf16.mxu0 0
    %1310 = vmatpush1.bf16.msra.mxu0 0
    %1311 = vmatprep.subr.bf16.mxu0 0
    %1312 = vmatpush1.bf16.msra.mxu0 0
    %1313 = vmatprep.subr.bf16.mxu0 0
    %1314 = vmatpush1.bf16.msra.mxu0 0
    %1315 = vmatprep.mubr.bf16.mxu0 0
    %1316 = vmatmul.mubr.bf16.gmra.mrb[0].mxu0 %v1281
    %v1317 = vpop.f32.mrb[0].mxu0
    %v1318 = vadd.f32 0.0, %v1317
    %v1319 = vpop.f32.mrb[0].mxu0
    %v1320 = vpop.f32.mrb[0].mxu0
    %v1321 = vadd.f32 0.0, %v1320
    %v1322 = vpop.f32.mrb[0].mxu0
    %1323 = vdwg.mxu0
    %v1326 = vrot.slane %v1318, 4
    %v1327 = vrot.slane %v1321, 4
    %v1328 = vsel %vm592, %v1326, %v1327
    %1329 = vrot.lane.b32.xlu0 %v1326, 104
    %v1330 = vpop.permute.xlu0 %1329
    %1331 = vrot.lane.b32.xlu0 %v1328, 104
    %v1332 = vpop.permute.xlu0 %1331
    %v1335 = vsel %vm592, %v1321, %v1330
    %v1336 = vld [vmem:[#allocation4 + $0xa0] sm:$0x7]
    %v1337 = vpack.c.bf16 %v1335, %v1318
    %v1338 = vpack.c.bf16 %v1332, %v1332
    %vm1339 = vcmask 195584
    %v1341 = vsel %vm1339, %v1336, 0
    %v1344 = vsel %vm592, %v1338, 0
    %1346 = vmatprep.subr.bf16.mxu0 0
    %1347 = vmatpush1.bf16.msra.mxu0 %v1337
    %1348 = vmatprep.subr.bf16.mxu0 0
    %1349 = vmatpush1.bf16.msra.mxu0 %v1344
    %1350 = vmatprep.subr.bf16.mxu0 0
    %1351 = vmatpush1.bf16.msra.mxu0 0
    %1352 = vmatprep.subr.bf16.mxu0 0
    %1353 = vmatpush1.bf16.msra.mxu0 0
    %1354 = vmatprep.subr.bf16.mxu0 0
    %1355 = vmatpush1.bf16.msra.mxu0 0
    %1356 = vmatprep.subr.bf16.mxu0 0
    %1357 = vmatpush1.bf16.msra.mxu0 0
    %1358 = vmatprep.subr.bf16.mxu0 0
    %1359 = vmatpush1.bf16.msra.mxu0 0
    %1360 = vmatprep.subr.bf16.mxu0 0
    %1361 = vmatpush1.bf16.msra.mxu0 0
    %1362 = vmatprep.subr.bf16.mxu0 0
    %1363 = vmatpush1.bf16.msra.mxu0 0
    %1364 = vmatprep.subr.bf16.mxu0 0
    %1365 = vmatpush1.bf16.msra.mxu0 0
    %1366 = vmatprep.subr.bf16.mxu0 0
    %1367 = vmatpush1.bf16.msra.mxu0 0
    %1368 = vmatprep.subr.bf16.mxu0 0
    %1369 = vmatpush1.bf16.msra.mxu0 0
    %1370 = vmatprep.subr.bf16.mxu0 0
    %1371 = vmatpush1.bf16.msra.mxu0 0
    %1372 = vmatprep.subr.bf16.mxu0 0
    %1373 = vmatpush1.bf16.msra.mxu0 0
    %1374 = vmatprep.subr.bf16.mxu0 0
    %1375 = vmatpush1.bf16.msra.mxu0 0
    %1376 = vmatprep.subr.bf16.mxu0 0
    %1377 = vmatpush1.bf16.msra.mxu0 0
    %1378 = vmatprep.mubr.bf16.mxu0 0
    %1379 = vmatmul.mubr.bf16.gmra.mrb[0].mxu0 %v1341
    %v1380 = vpop.f32.mrb[0].mxu0
    %v1381 = vadd.f32 0.0, %v1380
    %v1382 = vpop.f32.mrb[0].mxu0
    %v1383 = vpop.f32.mrb[0].mxu0
    %v1384 = vpop.f32.mrb[0].mxu0
    %1385 = vdwg.mxu0
    %vm1386 = vcmask 193536
    %v1387 = vsel %vm1386, %v1381, 0.0
    %v1388 = vrot.slane %v1387, 4
    %v1389 = vadd.f32 %v1387, %v1388
    %v1390 = vrot.slane %v1389, 2
    %v1391 = vadd.f32 %v1389, %v1390
    %v1392 = vrot.slane %v1391, 1
    %v1393 = vadd.f32 %v1391, %v1392
    %v1394 = vmul.f32 %v1381, %v1381
    %v1395 = vsel %vm1386, %v1394, 0.0
    %v1396 = vrot.slane %v1395, 4
    %v1397 = vadd.f32 %v1395, %v1396
    %v1398 = vrot.slane %v1397, 2
    %v1399 = vadd.f32 %v1397, %v1398
    %v1400 = vrot.slane %v1399, 1
    %v1401 = vadd.f32 %v1399, %v1400
    %v1402 = vsel %vm298, %v1393, %v1401
    %v1403 = vld [vmem:[#allocation6 + $0x108] sm:$0xff]
    %v1404 = vld [vmem:[#allocation6 + $0x110] sm:$0xff]
    %v1405 = vld [vmem:[#allocation6 + $0x118] sm:$0xff]
    %v1407 = vsel %vm1339, %v1402, 0
    %1409 = vmatprep.subr.mxu0 0.0
    %1410 = vmatpush1.msra.mxu0 %v1403
    %1411 = vmatprep.subr.mxu0 0.0
    %1412 = vmatpush1.msra.mxu0 %v1404
    %1413 = vmatprep.subr.mxu0 0.0
    %1414 = vmatpush1.msra.mxu0 %v1405
    %1415 = vmatprep.subr.mxu0 0.0
    %1416 = vmatpush1.msra.mxu0 0.0
    %1417 = vmatprep.subr.mxu0 0.0
    %1418 = vmatpush1.msra.mxu0 0.0
    %1419 = vmatprep.subr.mxu0 0.0
    %1420 = vmatpush1.msra.mxu0 0.0
    %1421 = vmatprep.subr.mxu0 0.0
    %1422 = vmatpush1.msra.mxu0 0.0
    %1423 = vmatprep.subr.mxu0 0.0
    %1424 = vmatpush1.msra.mxu0 0.0
    %1425 = vmatprep.subr.mxu0 0.0
    %1426 = vmatpush1.msra.mxu0 0.0
    %1427 = vmatprep.subr.mxu0 0.0
    %1428 = vmatpush1.msra.mxu0 0.0
    %1429 = vmatprep.subr.mxu0 0.0
    %1430 = vmatpush1.msra.mxu0 0.0
    %1431 = vmatprep.subr.mxu0 0.0
    %1432 = vmatpush1.msra.mxu0 0.0
    %1433 = vmatprep.subr.mxu0 0.0
    %1434 = vmatpush1.msra.mxu0 0.0
    %1435 = vmatprep.subr.mxu0 0.0
    %1436 = vmatpush1.msra.mxu0 0.0
    %1437 = vmatprep.subr.mxu0 0.0
    %1438 = vmatpush1.msra.mxu0 0.0
    %1439 = vmatprep.subr.mxu0 0.0
    %1440 = vmatpush1.msra.mxu0 0.0
    %1441 = vmatprep.subr.mxu0 0.0
    %1442 = vmatpush1.msra.mxu0 0.0
    %1443 = vmatprep.subr.mxu0 0.0
    %1444 = vmatpush1.msra.mxu0 0.0
    %1445 = vmatprep.subr.mxu0 0.0
    %1446 = vmatpush1.msra.mxu0 0.0
    %1447 = vmatprep.subr.mxu0 0.0
    %1448 = vmatpush1.msra.mxu0 0.0
    %1449 = vmatprep.subr.mxu0 0.0
    %1450 = vmatpush1.msra.mxu0 0.0
    %1451 = vmatprep.subr.mxu0 0.0
    %1452 = vmatpush1.msra.mxu0 0.0
    %1453 = vmatprep.subr.mxu0 0.0
    %1454 = vmatpush1.msra.mxu0 0.0
    %1455 = vmatprep.subr.mxu0 0.0
    %1456 = vmatpush1.msra.mxu0 0.0
    %1457 = vmatprep.subr.mxu0 0.0
    %1458 = vmatpush1.msra.mxu0 0.0
    %1459 = vmatprep.subr.mxu0 0.0
    %1460 = vmatpush1.msra.mxu0 0.0
    %1461 = vmatprep.subr.mxu0 0.0
    %1462 = vmatpush1.msra.mxu0 0.0
    %1463 = vmatprep.subr.mxu0 0.0
    %1464 = vmatpush1.msra.mxu0 0.0
    %1465 = vmatprep.subr.mxu0 0.0
    %1466 = vmatpush1.msra.mxu0 0.0
    %1467 = vmatprep.subr.mxu0 0.0
    %1468 = vmatpush1.msra.mxu0 0.0
    %1469 = vmatprep.subr.mxu0 0.0
    %1470 = vmatpush1.msra.mxu0 0.0
    %1471 = vmatprep.subr.mxu0 0.0
    %1472 = vmatpush1.msra.mxu0 0.0
    %1473 = vmatprep.mubr.f32.mxu0 0.0
    %1474 = vmatmul.mubr.f32.gmra.mrb[0].mxu0 %v1407
    %v1475 = vpop.f32.mrb[0].mxu0
    %v1476 = vadd.f32 0.0, %v1475
    %v1477 = vpop.f32.mrb[0].mxu0
    %1478 = vdwg.mxu0
    %v1479 = vmul.f32 %v1476, %v1476
    %v1481 = vrot.slane %v1479, 7
    %v1483 = vsub.f32 %v1476, %v1481
    %v1484 = vmax.f32 %v1483, 0.0
    %v1485 = vadd.f32 %v1484, 1e-05
    %v1486 = vrsqrt.pop %v1485
    %v1487 = vld [vmem:[#allocation6 + $0x120] sm:$0x1]
    %v1488 = vld [vmem:[#allocation6 + $0x121] sm:$0x1]
    %v1489 = vlaneseq
    %v1490 = vshrl.u32 %v1489, 7
    %v1491 = vsub.s32 0, %v1490
    %v1492 = vrot.slane %v1476, %v1491
    %v1493 = vsub.f32 %v1381, %v1492
    %v1495 = vrot.slane %v1487, 7
    %v1497 = vmul.f32 %v1486, %v1495
    %v1498 = vlaneseq
    %v1499 = vshrl.u32 %v1498, 7
    %v1500 = vsub.s32 1, %v1499
    %v1501 = vrot.slane %v1497, %v1500
    %v1502 = vmul.f32 %v1493, %v1501
    %v1503 = vlaneseq
    %v1504 = vshrl.u32 %v1503, 7
    %v1505 = vsub.s32 0, %v1504
    %v1506 = vrot.slane %v1488, %v1505
    %v1507 = vadd.f32 %v1502, %v1506
    %v1508 = vmax.f32 %v1507, 0.0
    %v1509 = vld [vmem:[#allocation4 + $0xa8] sm:$0xf]
    %v1510 = vld [vmem:[#allocation4 + $0xac] sm:$0xf]
    %v1511 = vld [vmem:[#allocation4 + $0xb0] sm:$0xf]
    %v1512 = vpack.c.bf16 %v1508, %v1508
    %v1516 = vunpack.c.l.b16 %v1509
    %v1517 = vunpack.c.l.b16 %v1510
    %v1518 = vunpack.c.l.b16 %v1511
    %v1519 = vpack.c.b16 %v1517, %v1516
    %v1520 = vpack.c.b16 %v1518, %v1518
    %v1523 = vsel %vm1339, %v1512, 0
    %v1526 = vsel %vm592, %v1520, 0
    %1528 = vmatprep.subr.bf16.mxu0 0
    %1529 = vmatpush1.bf16.msra.mxu0 %v1519
    %1530 = vmatprep.subr.bf16.mxu0 0
    %1531 = vmatpush1.bf16.msra.mxu0 %v1526
    %1532 = vmatprep.subr.bf16.mxu0 0
    %1533 = vmatpush1.bf16.msra.mxu0 0
    %1534 = vmatprep.subr.bf16.mxu0 0
    %1535 = vmatpush1.bf16.msra.mxu0 0
    %1536 = vmatprep.subr.bf16.mxu0 0
    %1537 = vmatpush1.bf16.msra.mxu0 0
    %1538 = vmatprep.subr.bf16.mxu0 0
    %1539 = vmatpush1.bf16.msra.mxu0 0
    %1540 = vmatprep.subr.bf16.mxu0 0
    %1541 = vmatpush1.bf16.msra.mxu0 0
    %1542 = vmatprep.subr.bf16.mxu0 0
    %1543 = vmatpush1.bf16.msra.mxu0 0
    %1544 = vmatprep.subr.bf16.mxu0 0
    %1545 = vmatpush1.bf16.msra.mxu0 0
    %1546 = vmatprep.subr.bf16.mxu0 0
    %1547 = vmatpush1.bf16.msra.mxu0 0
    %1548 = vmatprep.subr.bf16.mxu0 0
    %1549 = vmatpush1.bf16.msra.mxu0 0
    %1550 = vmatprep.subr.bf16.mxu0 0
    %1551 = vmatpush1.bf16.msra.mxu0 0
    %1552 = vmatprep.subr.bf16.mxu0 0
    %1553 = vmatpush1.bf16.msra.mxu0 0
    %1554 = vmatprep.subr.bf16.mxu0 0
    %1555 = vmatpush1.bf16.msra.mxu0 0
    %1556 = vmatprep.subr.bf16.mxu0 0
    %1557 = vmatpush1.bf16.msra.mxu0 0
    %1558 = vmatprep.subr.bf16.mxu0 0
    %1559 = vmatpush1.bf16.msra.mxu0 0
    %1560 = vmatprep.mubr.bf16.mxu0 0
    %1561 = vmatmul.mubr.bf16.gmra.mrb[0].mxu0 %v1523
    %v1562 = vpop.f32.mrb[0].mxu0
    %v1563 = vadd.f32 0.0, %v1562
    %v1564 = vpop.f32.mrb[0].mxu0
    %v1565 = vpop.f32.mrb[0].mxu0
    %v1566 = vpop.f32.mrb[0].mxu0
    %1567 = vdwg.mxu0
    %v1569 = vrot.slane %v1563, 1
    %1570 = vrot.lane.b32.xlu0 %v1569, 112
    %v1571 = vpop.permute.xlu0 %1570
    %v1573 = vadd.f32 %v1563, %v1571
    %v1575 = vrot.slane %v1573, 1
    %vm1577 = vcmask 1041408
    %v1578 = vsel %vm1577, %v1573, %v1575
    %vm1579 = vcmask 125952
    %v1580 = vsel %vm1579, %v1578, 0.0
    %v1581 = vrot.slane %v1580, 4
    %v1582 = vadd.f32 %v1580, %v1581
    %v1583 = vrot.slane %v1582, 2
    %v1584 = vadd.f32 %v1582, %v1583
    %v1585 = vrot.slane %v1584, 1
    %v1586 = vadd.f32 %v1584, %v1585
    %v1587 = vmul.f32 %v1578, %v1578
    %v1588 = vsel %vm1579, %v1587, 0.0
    %v1589 = vrot.slane %v1588, 4
    %v1590 = vadd.f32 %v1588, %v1589
    %v1591 = vrot.slane %v1590, 2
    %v1592 = vadd.f32 %v1590, %v1591
    %v1593 = vrot.slane %v1592, 1
    %v1594 = vadd.f32 %v1592, %v1593
    %v1595 = vsel %vm298, %v1586, %v1594
    %v1596 = vld [vmem:[#allocation6 + $0x128] sm:$0xff]
    %v1597 = vld [vmem:[#allocation6 + $0x130] sm:$0xff]
    %vm1598 = vcmask 130048
    %v1600 = vsel %vm1598, %v1595, 0
    %1602 = vmatprep.subr.mxu0 0.0
    %1603 = vmatpush1.msra.mxu0 %v1596
    %1604 = vmatprep.subr.mxu0 0.0
    %1605 = vmatpush1.msra.mxu0 %v1597
    %1606 = vmatprep.subr.mxu0 0.0
    %1607 = vmatpush1.msra.mxu0 0.0
    %1608 = vmatprep.subr.mxu0 0.0
    %1609 = vmatpush1.msra.mxu0 0.0
    %1610 = vmatprep.subr.mxu0 0.0
    %1611 = vmatpush1.msra.mxu0 0.0
    %1612 = vmatprep.subr.mxu0 0.0
    %1613 = vmatpush1.msra.mxu0 0.0
    %1614 = vmatprep.subr.mxu0 0.0
    %1615 = vmatpush1.msra.mxu0 0.0
    %1616 = vmatprep.subr.mxu0 0.0
    %1617 = vmatpush1.msra.mxu0 0.0
    %1618 = vmatprep.subr.mxu0 0.0
    %1619 = vmatpush1.msra.mxu0 0.0
    %1620 = vmatprep.subr.mxu0 0.0
    %1621 = vmatpush1.msra.mxu0 0.0
    %1622 = vmatprep.subr.mxu0 0.0
    %1623 = vmatpush1.msra.mxu0 0.0
    %1624 = vmatprep.subr.mxu0 0.0
    %1625 = vmatpush1.msra.mxu0 0.0
    %1626 = vmatprep.subr.mxu0 0.0
    %1627 = vmatpush1.msra.mxu0 0.0
    %1628 = vmatprep.subr.mxu0 0.0
    %1629 = vmatpush1.msra.mxu0 0.0
    %1630 = vmatprep.subr.mxu0 0.0
    %1631 = vmatpush1.msra.mxu0 0.0
    %1632 = vmatprep.subr.mxu0 0.0
    %1633 = vmatpush1.msra.mxu0 0.0
    %1634 = vmatprep.subr.mxu0 0.0
    %1635 = vmatpush1.msra.mxu0 0.0
    %1636 = vmatprep.subr.mxu0 0.0
    %1637 = vmatpush1.msra.mxu0 0.0
    %1638 = vmatprep.subr.mxu0 0.0
    %1639 = vmatpush1.msra.mxu0 0.0
    %1640 = vmatprep.subr.mxu0 0.0
    %1641 = vmatpush1.msra.mxu0 0.0
    %1642 = vmatprep.subr.mxu0 0.0
    %1643 = vmatpush1.msra.mxu0 0.0
    %1644 = vmatprep.subr.mxu0 0.0
    %1645 = vmatpush1.msra.mxu0 0.0
    %1646 = vmatprep.subr.mxu0 0.0
    %1647 = vmatpush1.msra.mxu0 0.0
    %1648 = vmatprep.subr.mxu0 0.0
    %1649 = vmatpush1.msra.mxu0 0.0
    %1650 = vmatprep.subr.mxu0 0.0
    %1651 = vmatpush1.msra.mxu0 0.0
    %1652 = vmatprep.subr.mxu0 0.0
    %1653 = vmatpush1.msra.mxu0 0.0
    %1654 = vmatprep.subr.mxu0 0.0
    %1655 = vmatpush1.msra.mxu0 0.0
    %1656 = vmatprep.subr.mxu0 0.0
    %1657 = vmatpush1.msra.mxu0 0.0
    %1658 = vmatprep.subr.mxu0 0.0
    %1659 = vmatpush1.msra.mxu0 0.0
    %1660 = vmatprep.subr.mxu0 0.0
    %1661 = vmatpush1.msra.mxu0 0.0
    %1662 = vmatprep.subr.mxu0 0.0
    %1663 = vmatpush1.msra.mxu0 0.0
    %1664 = vmatprep.subr.mxu0 0.0
    %1665 = vmatpush1.msra.mxu0 0.0
    %1666 = vmatprep.mubr.f32.mxu0 0.0
    %1667 = vmatmul.mubr.f32.gmra.mrb[0].mxu0 %v1600
    %v1668 = vpop.f32.mrb[0].mxu0
    %v1669 = vadd.f32 0.0, %v1668
    %v1670 = vpop.f32.mrb[0].mxu0
    %1671 = vdwg.mxu0
    %v1672 = vmul.f32 %v1669, %v1669
    %v1674 = vrot.slane %v1672, 7
    %v1676 = vsub.f32 %v1669, %v1674
    %v1677 = vmax.f32 %v1676, 0.0
    %v1678 = vadd.f32 %v1677, 1e-05
    %v1679 = vrsqrt.pop %v1678
    %v1680 = vld [vmem:[#allocation6 + $0x138] sm:$0x1]
    %v1681 = vld [vmem:[#allocation6 + $0x139] sm:$0x1]
    %v1682 = vlaneseq
    %v1683 = vshrl.u32 %v1682, 7
    %v1684 = vsub.s32 0, %v1683
    %v1685 = vrot.slane %v1669, %v1684
    %v1686 = vsub.f32 %v1578, %v1685
    %v1688 = vrot.slane %v1680, 7
    %v1690 = vmul.f32 %v1679, %v1688
    %v1691 = vlaneseq
    %v1692 = vshrl.u32 %v1691, 7
    %v1693 = vsub.s32 1, %v1692
    %v1694 = vrot.slane %v1690, %v1693
    %v1695 = vmul.f32 %v1686, %v1694
    %v1696 = vlaneseq
    %v1697 = vshrl.u32 %v1696, 7
    %v1698 = vsub.s32 0, %v1697
    %v1699 = vrot.slane %v1681, %v1698
    %v1700 = vadd.f32 %v1695, %v1699
    %v1701 = vmax.f32 %v1700, 0.0
    %v1702 = vld [vmem:[#allocation4 + $0xb8] sm:$0xf]
    %v1703 = vld [vmem:[#allocation4 + $0xbc] sm:$0xf]
    %v1704 = vpack.c.bf16 %v1701, %v1701
    %v1707 = vunpack.c.l.b16 %v1702
    %v1708 = vunpack.c.l.b16 %v1703
    %v1709 = vpack.c.b16 %v1708, %v1707
    %v1712 = vsel %vm1598, %v1704, 0
    %1714 = vmatprep.subr.bf16.mxu0 0
    %1715 = vmatpush1.bf16.msra.mxu0 %v1709
    %1716 = vmatprep.subr.bf16.mxu0 0
    %1717 = vmatpush1.bf16.msra.mxu0 0
    %1718 = vmatprep.subr.bf16.mxu0 0
    %1719 = vmatpush1.bf16.msra.mxu0 0
    %1720 = vmatprep.subr.bf16.mxu0 0
    %1721 = vmatpush1.bf16.msra.mxu0 0
    %1722 = vmatprep.subr.bf16.mxu0 0
    %1723 = vmatpush1.bf16.msra.mxu0 0
    %1724 = vmatprep.subr.bf16.mxu0 0
    %1725 = vmatpush1.bf16.msra.mxu0 0
    %1726 = vmatprep.subr.bf16.mxu0 0
    %1727 = vmatpush1.bf16.msra.mxu0 0
    %1728 = vmatprep.subr.bf16.mxu0 0
    %1729 = vmatpush1.bf16.msra.mxu0 0
    %1730 = vmatprep.subr.bf16.mxu0 0
    %1731 = vmatpush1.bf16.msra.mxu0 0
    %1732 = vmatprep.subr.bf16.mxu0 0
    %1733 = vmatpush1.bf16.msra.mxu0 0
    %1734 = vmatprep.subr.bf16.mxu0 0
    %1735 = vmatpush1.bf16.msra.mxu0 0
    %1736 = vmatprep.subr.bf16.mxu0 0
    %1737 = vmatpush1.bf16.msra.mxu0 0
    %1738 = vmatprep.subr.bf16.mxu0 0
    %1739 = vmatpush1.bf16.msra.mxu0 0
    %1740 = vmatprep.subr.bf16.mxu0 0
    %1741 = vmatpush1.bf16.msra.mxu0 0
    %1742 = vmatprep.subr.bf16.mxu0 0
    %1743 = vmatpush1.bf16.msra.mxu0 0
    %1744 = vmatprep.subr.bf16.mxu0 0
    %1745 = vmatpush1.bf16.msra.mxu0 0
    %1746 = vmatprep.mubr.bf16.mxu0 0
    %1747 = vmatmul.mubr.bf16.gmra.mrb[0].mxu0 %v1712
    %v1748 = vpop.f32.mrb[0].mxu0
    %v1749 = vadd.f32 0.0, %v1748
    %v1750 = vpop.f32.mrb[0].mxu0
    %v1751 = vpop.f32.mrb[0].mxu0
    %v1752 = vpop.f32.mrb[0].mxu0
    %1753 = vdwg.mxu0
    %v1754 = vsel %vm1577, %v1749, 0.0
    %v1755 = vrot.slane %v1754, 4
    %v1756 = vadd.f32 %v1754, %v1755
    %v1757 = vrot.slane %v1756, 2
    %v1758 = vadd.f32 %v1756, %v1757
    %v1759 = vrot.slane %v1758, 1
    %v1760 = vadd.f32 %v1758, %v1759
    %v1762 = vrot.slane %v1749, 2
    %v1764 = vsel %vm1577, %v1762, 0.0
    %v1765 = vrot.slane %v1764, 4
    %v1766 = vadd.f32 %v1764, %v1765
    %v1767 = vrot.slane %v1766, 2
    %v1768 = vadd.f32 %v1766, %v1767
    %v1769 = vrot.slane %v1768, 1
    %v1770 = vadd.f32 %v1768, %v1769
    %v1771 = vsel %vm298, %v1760, %v1770
    %v1772 = vld [vmem:[#allocation6 + $0x140] sm:$0x1]
    %v1773 = vlaneseq
    %v1774 = vshrl.u32 %v1773, 7
    %v1775 = vsub.s32 0, %v1774
    %v1776 = vrot.slane %v1772, %v1775
    %v1777 = vadd.f32 %v1771, %v1776
    %v1778 = vld [vmem:[#allocation6 + $0x141] sm:$0x1]
    %v1779 = vlaneseq
    %v1780 = vshrl.u32 %v1779, 7
    %v1781 = vsub.s32 0, %v1780
    %v1782 = vrot.slane %v1778, %v1781
    %vm1783 = vcmp.gt.f32.partialorder %v1782, 0.5
    %v1784 = vld [vmem:[#allocation6 + $0x142] sm:$0x1]
    %v1785 = vlaneseq
    %v1786 = vshrl.u32 %v1785, 7
    %v1787 = vsub.s32 0, %v1786
    %v1788 = vrot.slane %v1784, %v1787
    %vm1789 = vcmp.gt.f32.partialorder %v1788, 0.5
    %v1790 = vld [vmem:[#allocation6 + $0x143] sm:$0x1]
    %v1791 = vlaneseq
    %v1792 = vshrl.u32 %v1791, 7
    %v1793 = vsub.s32 0, %v1792
    %v1794 = vrot.slane %v1790, %v1793
    %vm1795 = vcmp.gt.f32.partialorder %v1794, 0.5
    %v1796 = vsel %vm1783, %v1777, -1e+30
    %v1797 = vsel %vm1577, %v1796, -inf
    %1798 = vmax.xlane.f32.xlu0 %v1797
    %v1799 = vpop.xlane.xlu0 %1798
    %v1800 = vsub.f32 %v1777, %v1799
    %v1801 = vmul.f32 %v1800, 1.442695
    %v1802 = vpow.pop %v1801
    %v1803 = vsel %vm1783, %v1802, 0.0
    %v1804 = vsel %vm1577, %v1803, 0.0
    %1805 = vadd.xlane.f32.xlu0 %v1804
    %v1806 = vpop.xlane.xlu0 %1805
    %v1807 = vrcp.pop %v1806
    %v1808 = vmul.f32 %v1802, %v1807
    %v1809 = vsel %vm1783, %v1808, %v1777
    %v1810 = vmul.f32 %v1799, 1.442695
    %v1811 = vpow.pop %v1810
    %v1812 = vmul.f32 %v1802, %v1811
    %v1813 = vsel %vm1789, %v1812, %v1809
    %v1814 = vtanh.pop %v1777
    %v1815 = vsel %vm1795, %v1814, %v1813
    %1816 = vst [vmem:[%s3] sm:$0x3] %v1815
    // Predicated region
    $region26: #{forward.1} parent=1 // pred_check
      _
    $region27: #{forward.1} parent=1 // pred_check_branch
      %1818 = sbr.rel (0) target = $region29
    $region28: #{forward.1} parent=1 // pred_region
      _
    $region29: #{forward.1} parent=1 // pred_fallthru
      _
    // Predicated region
    $region30: #{forward.1} parent=1 // pred_check
      _
    $region31: #{forward.1} parent=1 // pred_check_branch
      %1820 = sbr.rel (0) target = $region33
    $region32: #{forward.1} parent=1 // pred_region
      _
    $region33: #{forward.1} parent=1 // pred_fallthru
      _
    %1821 = vsyncpa [#allocation3], 1
    %1822 = vsyncpa [#allocation5], 1

</llo_original>
